<compile_context>
chip_gen: v7x
topology: tpu7x:2x2x1
jax: 0.10.0
libtpu: 0.0.40
codegen_flags: <defaults>
</compile_context>

<pallas_src>
import functools

import numpy as np
import jax
import jax.numpy as jnp
from jax.experimental import pallas as pl
from jax.experimental.pallas import tpu as pltpu

LEAKY_SLOPE = 0.01
_F = 16                                            # conv channels (fixed by the module)
_HALF_LOG_2PI = np.float32(0.5 * np.log(2.0 * np.pi))
_VMEM = pl.BlockSpec(memory_space=pltpu.MemorySpace.VMEM)


def _leaky(v):
    return jnp.where(v >= 0.0, v, LEAKY_SLOPE * v)


# ----------------------------- fused Pallas kernel -----------------------------

def _vae_kernel(x_ref, eps_ref,
                t1_ref, b1_ref, wenc_ref, benc_ref,
                wdi_ref, bdi_ref, t2_ref, b2_ref, wdo_ref, bdo_ref,
                z_ref, elbo_ref, re_ref, kl_ref,
                *, latent, beta):
    L = latent
    B, M = x_ref.shape                              # M = C*H*H (NCHW flatten)
    inv_b = np.float32(1.0 / B)

    x = x_ref[...]                                  # (B, M)

    # ---------- encoder: Conv2d(C,16,k=5,'same') as one block-Toeplitz matmul ----
    h = _leaky(jnp.dot(x, t1_ref[...], preferred_element_type=jnp.float32)
               + b1_ref[...])                       # (B, 16*H*H), NCHW flatten

    # ---------- encoder FC: Linear(16*H*H, 2L) ----------
    enc = jnp.dot(h, wenc_ref[...], preferred_element_type=jnp.float32) + benc_ref[...]
    mu = enc[:, :L]
    lv = enc[:, L:]

    # ---------- reparameterization (eps shared across batch) + KL regularizer ----
    z = mu + jnp.exp(0.5 * lv) * eps_ref[...]
    z_ref[...] = z
    # D*log(2*pi) constants cancel between log_prior and log_posterior.
    log_post = -0.5 * ((z - mu) ** 2 * jnp.exp(-lv) + lv)
    log_prior = -0.5 * (z * z)
    kl_b = -jnp.sum(log_prior - log_post, axis=1, keepdims=True)   # (B, 1)
    kl = jnp.sum(kl_b, axis=0, keepdims=True) * inv_b              # (1, 1)

    # ---------- decoder input: Linear(L, 16*H*H) + LeakyReLU ----------
    d = _leaky(jnp.dot(z, wdi_ref[...], preferred_element_type=jnp.float32)
               + bdi_ref[...])                      # (B, 16*H*H), NCHW flatten

    # ---------- ConvTranspose2d(16,C,k=5,s=1,p=2) as one block-Toeplitz matmul ----
    c2 = _leaky(jnp.dot(d, t2_ref[...], preferred_element_type=jnp.float32)
                + b2_ref[...])                      # (B, C*H*H), NCHW flatten

    # ---------- decoder output: Linear(C*H*H, 2*C*H*H) ----------
    dec = jnp.dot(c2, wdo_ref[...], preferred_element_type=jnp.float32) + bdo_ref[...]
    dmu = dec[:, :M]
    dlv = dec[:, M:]

    # ---------- Gaussian reconstruction error ----------
    ll = 0.5 * (dmu - x) ** 2 * jnp.exp(-dlv) + 0.5 * dlv + _HALF_LOG_2PI
    re_b = jnp.sum(ll, axis=1, keepdims=True)       # (B, 1)
    re = jnp.sum(re_b, axis=0, keepdims=True) * inv_b

    kl_ref[...] = kl
    re_ref[...] = re
    elbo_ref[...] = re + np.float32(beta) * kl


# ----------------------- one-time parameter preparation -----------------------

def _conv_as_toeplitz(w_oihw, H, pad):
    """Exact block-Toeplitz matrix T of shape (I*H*H, O*H*H) such that
    x.reshape(I*H*H) @ T == conv2d(x, w, stride=1, padding=pad).reshape(O*H*H)
    for an (I, H, H) NCHW input.  Built on the host; runs once."""
    O, I, KH, KW = w_oihw.shape
    P = H * H
    T = np.zeros((I * P, O * P), np.float32)
    rows = np.arange(I)[:, None] * P                # (I, 1)
    cols = np.arange(O)[None, :] * P                # (1, O)
    for kh in range(KH):
        for kw in range(KW):
            wk = np.ascontiguousarray(w_oihw[:, :, kh, kw]).T.astype(np.float32)  # (I, O)
            for oy in range(H):
                iy = oy + kh - pad
                if iy < 0 or iy >= H:
                    continue
                for ox in range(H):
                    ix = ox + kw - pad
                    if ix < 0 or ix >= H:
                        continue
                    T[rows + (iy * H + ix), cols + (oy * H + ox)] = wk
    return T


def prepare_params(params, *, latent_dim, input_dim, channels):
    """Fold convs into block-Toeplitz matrices, transpose Linear weights and
    broadcast biases — all in NCHW-flatten order.  Run once, outside jit."""
    C, H, L, F = channels, input_dim, latent_dim, _F
    P = H * H
    M = C * P
    if H % 5 != 3:
        # Otherwise the module's ConvTranspose padding (5 - H % 5) does not
        # preserve spatial size and its own .view() would fail.
        raise ValueError("input_dim must satisfy input_dim % 5 == 3")

    w1 = np.asarray(params['conv1_w'], np.float32)              # (16, C, 5, 5), Conv2d
    w2 = np.asarray(params['conv2_w'], np.float32)              # (16, C, 5, 5), ConvTranspose2d
    # ConvTranspose2d(s=1, p) == conv with flipped kernel, swapped channels, pad k-1-p.
    w2eq = np.flip(w2, (2, 3)).transpose(1, 0, 2, 3)             # (C, 16, 5, 5)
    pad_eq = 4 - (5 - H % 5)                                     # == 2 ('same')

    t1 = _conv_as_toeplitz(w1, H, pad=2)                         # (C*P, 16*P)
    t2 = _conv_as_toeplitz(w2eq, H, pad=pad_eq)                  # (16*P, C*P)

    f32 = np.float32
    return dict(
        t1=jnp.asarray(t1),
        b1=jnp.asarray(np.repeat(np.asarray(params['conv1_b'], f32), P).reshape(1, F * P)),
        wenc=jnp.asarray(np.asarray(params['enc_fc_w'], f32).T),            # (16*P, 2L)
        benc=jnp.asarray(np.asarray(params['enc_fc_b'], f32).reshape(1, 2 * L)),
        wdi=jnp.asarray(np.asarray(params['dec_in_w'], f32).T),             # (L, 16*P)
        bdi=jnp.asarray(np.asarray(params['dec_in_b'], f32).reshape(1, F * P)),
        t2=jnp.asarray(t2),
        b2=jnp.asarray(np.repeat(np.asarray(params['conv2_b'], f32), P).reshape(1, C * P)),
        wdo=jnp.asarray(np.asarray(params['dec_out_w'], f32).T),            # (C*P, 2*C*P)
        bdo=jnp.asarray(np.asarray(params['dec_out_b'], f32).reshape(1, 2 * M)),
    )


# --------------------------------- wrapper ------------------------------------

def vae_forward(x, prepped, eps, *, latent_dim, input_dim, channels, beta):
    B = x.shape[0]
    C, H, L = channels, input_dim, latent_dim
    M = C * H * H

    x_flat = x.reshape(B, M)                        # NCHW flatten (free reshape)

    kernel = functools.partial(_vae_kernel, latent=L, beta=beta)
    z, elbo, re, kl = pl.pallas_call(
        kernel,
        out_shape=(jax.ShapeDtypeStruct((B, L), jnp.float32),
                   jax.ShapeDtypeStruct((1, 1), jnp.float32),
                   jax.ShapeDtypeStruct((1, 1), jnp.float32),
                   jax.ShapeDtypeStruct((1, 1), jnp.float32)),
        in_specs=[_VMEM] * 12,
        out_specs=(_VMEM, _VMEM, _VMEM, _VMEM),
    )(x_flat, eps.reshape(1, L),
      prepped['t1'], prepped['b1'], prepped['wenc'], prepped['benc'],
      prepped['wdi'], prepped['bdi'], prepped['t2'], prepped['b2'],
      prepped['wdo'], prepped['bdo'])
    return elbo[0, 0], re[0, 0], kl[0, 0], z


# --------------------------- pure-JAX reference --------------------------------

def vae_forward_ref(x, params, eps, *, latent_dim, input_dim, channels, beta):
    B = x.shape[0]
    C, H, L = channels, input_dim, latent_dim
    P = H * H
    M = C * P
    dn = ('NCHW', 'OIHW', 'NCHW')

    c1 = jax.lax.conv_general_dilated(x, params['conv1_w'], (1, 1), 'SAME',
                                      dimension_numbers=dn)
    c1 = _leaky(c1 + params['conv1_b'].reshape(1, _F, 1, 1))
    enc = c1.reshape(B, _F * P) @ params['enc_fc_w'].T + params['enc_fc_b']
    mu, lv = enc[:, :L], enc[:, L:]

    z = mu + jnp.exp(0.5 * lv) * eps.reshape(1, L)
    log_post = -0.5 * ((z - mu) ** 2 * jnp.exp(-lv) + lv)
    log_prior = -0.5 * z ** 2
    kl = -jnp.mean(jnp.sum(log_prior - log_post, axis=-1))

    d = _leaky(z @ params['dec_in_w'].T + params['dec_in_b'])
    dimg = d.reshape(B, _F, H, H)
    w2eq = jnp.flip(params['conv2_w'], (2, 3)).transpose(1, 0, 2, 3)
    c2 = jax.lax.conv_general_dilated(dimg, w2eq, (1, 1), 'SAME',
                                      dimension_numbers=dn)
    c2 = _leaky(c2 + params['conv2_b'].reshape(1, C, 1, 1))
    dec = c2.reshape(B, M) @ params['dec_out_w'].T + params['dec_out_b']
    dmu, dlv = dec[:, :M], dec[:, M:]

    xf = x.reshape(B, M)
    ll = 0.5 * (dmu - xf) ** 2 * jnp.exp(-dlv) + 0.5 * dlv + _HALF_LOG_2PI
    re = jnp.mean(jnp.sum(ll, axis=-1))
    elbo = re + beta * kl
    return elbo, re, kl, z


# ------------------------------ parameter set-up -------------------------------

def init_params(key, latent_dim, input_dim, channels):
    H = input_dim
    ks = jax.random.split(key, 10)

    def w(k, shape, scale=0.05):
        return scale * jax.random.normal(k, shape, jnp.float32)

    return dict(
        conv1_w=w(ks[0], (_F, channels, 5, 5)),                 # Conv2d
        conv1_b=w(ks[1], (_F,)),
        enc_fc_w=w(ks[2], (2 * latent_dim, _F * H * H)),        # Linear (out, in)
        enc_fc_b=w(ks[3], (2 * latent_dim,)),
        dec_in_w=w(ks[4], (_F * H * H, latent_dim)),            # Linear (out, in)
        dec_in_b=w(ks[5], (_F * H * H,)),
        conv2_w=w(ks[6], (_F, channels, 5, 5)),                 # ConvTranspose2d
        conv2_b=w(ks[7], (channels,)),
        dec_out_w=w(ks[8], (2 * channels * H * H, channels * H * H)),
        dec_out_b=w(ks[9], (2 * channels * H * H,)),
    )


if __name__ == "__main__":
    # input_dim must satisfy input_dim % 5 == 3 so the module's ConvTranspose
    # padding (5 - input_dim % 5) == 2 preserves spatial size, as its .view implies.
    latent_dim, input_dim, channels, batch, beta = 8, 8, 4, 2, 1.0

    key = jax.random.PRNGKey(0)
    kx, kp, ke = jax.random.split(key, 3)
    x = jax.random.normal(kx, (batch, channels, input_dim, input_dim), jnp.float32)
    params = init_params(kp, latent_dim, input_dim, channels)
    # eps sampled once outside the kernel, shape (latent_dim,), shared across
    # the batch — exactly what the PyTorch module's reparameterization() does.
    eps = jax.random.normal(ke, (latent_dim,), jnp.float32)

    prepped = prepare_params(params, latent_dim=latent_dim,
                             input_dim=input_dim, channels=channels)

    fwd = jax.jit(functools.partial(
        vae_forward, latent_dim=latent_dim, input_dim=input_dim,
        channels=channels, beta=beta))
    elbo, re, kl, z = fwd(x, prepped, eps)
    jax.block_until_ready((elbo, re, kl, z))

    # independent pure-JAX reference (lax.conv, full f32 precision) for a sanity check
    with jax.default_matmul_precision("highest"):
        elbo_r, re_r, kl_r, z_r = vae_forward_ref(
            x, params, eps, latent_dim=latent_dim, input_dim=input_dim,
            channels=channels, beta=beta)
    np.testing.assert_allclose(np.array(elbo), np.array(elbo_r), rtol=2e-3, atol=2e-3)
    np.testing.assert_allclose(np.array(re), np.array(re_r), rtol=2e-3, atol=2e-3)
    np.testing.assert_allclose(np.array(kl), np.array(kl_r), rtol=2e-3, atol=2e-3)
    np.testing.assert_allclose(np.array(z), np.array(z_r), rtol=2e-3, atol=2e-3)

    print("KERNEL_OK")
</pallas_src>

<mosaic_0001>
module attributes {stable_mosaic.version = 11 : i64} {
  func.func @_vae_kernel(%arg0: memref<2x256xf32, #tpu.memory_space<vmem>>, %arg1: memref<1x8xf32, #tpu.memory_space<vmem>>, %arg2: memref<256x1024xf32, #tpu.memory_space<vmem>>, %arg3: memref<1x1024xf32, #tpu.memory_space<vmem>>, %arg4: memref<1024x16xf32, #tpu.memory_space<vmem>>, %arg5: memref<1x16xf32, #tpu.memory_space<vmem>>, %arg6: memref<8x1024xf32, #tpu.memory_space<vmem>>, %arg7: memref<1x1024xf32, #tpu.memory_space<vmem>>, %arg8: memref<1024x256xf32, #tpu.memory_space<vmem>>, %arg9: memref<1x256xf32, #tpu.memory_space<vmem>>, %arg10: memref<256x512xf32, #tpu.memory_space<vmem>>, %arg11: memref<1x512xf32, #tpu.memory_space<vmem>>, %arg12: memref<2x8xf32, #tpu.memory_space<vmem>>, %arg13: memref<1x1xf32, #tpu.memory_space<vmem>>, %arg14: memref<1x1xf32, #tpu.memory_space<vmem>>, %arg15: memref<1x1xf32, #tpu.memory_space<vmem>>) attributes {dimension_semantics = [], scalar_prefetch = 0 : i64, scratch_operands = 0 : i64, tpu.core_type = #tpu.core_type<tc>} {
    %c0 = arith.constant 0 : index
    %c0_0 = arith.constant 0 : index
    %0 = vector.load %arg0[%c0, %c0_0] : memref<2x256xf32, #tpu.memory_space<vmem>>, vector<2x256xf32>
    %c0_1 = arith.constant 0 : index
    %c0_2 = arith.constant 0 : index
    %1 = vector.load %arg2[%c0_1, %c0_2] : memref<256x1024xf32, #tpu.memory_space<vmem>>, vector<256x1024xf32>
    %cst = arith.constant dense<0.000000e+00> : vector<2x1024xf32>
    %2 = tpu.matmul %0, %1, %cst {dimension_numbers = #tpu.dot_dimension_numbers<[1], [0], [0], [1], [0, 0, 1, 1], [], []>} : vector<2x256xf32>, vector<256x1024xf32>, vector<2x1024xf32> -> vector<2x1024xf32>
    %c0_3 = arith.constant 0 : index
    %c0_4 = arith.constant 0 : index
    %3 = vector.load %arg3[%c0_3, %c0_4] : memref<1x1024xf32, #tpu.memory_space<vmem>>, vector<1x1024xf32>
    %4 = vector.broadcast %3 : vector<1x1024xf32> to vector<2x1024xf32>
    %5 = arith.addf %2, %4 : vector<2x1024xf32>
    %cst_5 = arith.constant 0.000000e+00 : f32
    %6 = vector.broadcast %cst_5 : f32 to vector<2x1024xf32>
    %7 = arith.cmpf oge, %5, %6 : vector<2x1024xf32>
    %cst_6 = arith.constant 0.00999999977 : f32
    %8 = vector.broadcast %cst_6 : f32 to vector<2x1024xf32>
    %9 = arith.mulf %8, %5 : vector<2x1024xf32>
    %10 = arith.select %7, %5, %9 : vector<2x1024xi1>, vector<2x1024xf32>
    %c0_7 = arith.constant 0 : index
    %c0_8 = arith.constant 0 : index
    %11 = vector.load %arg4[%c0_7, %c0_8] : memref<1024x16xf32, #tpu.memory_space<vmem>>, vector<1024x16xf32>
    %cst_9 = arith.constant dense<0.000000e+00> : vector<2x16xf32>
    %12 = tpu.matmul %10, %11, %cst_9 {dimension_numbers = #tpu.dot_dimension_numbers<[1], [0], [0], [1], [0, 0, 1, 1], [], []>} : vector<2x1024xf32>, vector<1024x16xf32>, vector<2x16xf32> -> vector<2x16xf32>
    %c0_10 = arith.constant 0 : index
    %c0_11 = arith.constant 0 : index
    %13 = vector.load %arg5[%c0_10, %c0_11] : memref<1x16xf32, #tpu.memory_space<vmem>>, vector<1x16xf32>
    %14 = vector.broadcast %13 : vector<1x16xf32> to vector<2x16xf32>
    %15 = arith.addf %12, %14 : vector<2x16xf32>
    %16 = vector.extract_strided_slice %15 {offsets = [0, 0], sizes = [2, 8], strides = [1, 1]} : vector<2x16xf32> to vector<2x8xf32>
    %17 = vector.extract_strided_slice %15 {offsets = [0, 8], sizes = [2, 8], strides = [1, 1]} : vector<2x16xf32> to vector<2x8xf32>
    %cst_12 = arith.constant 5.000000e-01 : f32
    %18 = vector.broadcast %cst_12 : f32 to vector<2x8xf32>
    %19 = arith.mulf %18, %17 : vector<2x8xf32>
    %20 = math.exp %19 : vector<2x8xf32>
    %c0_13 = arith.constant 0 : index
    %c0_14 = arith.constant 0 : index
    %21 = vector.load %arg1[%c0_13, %c0_14] : memref<1x8xf32, #tpu.memory_space<vmem>>, vector<1x8xf32>
    %22 = vector.broadcast %21 : vector<1x8xf32> to vector<2x8xf32>
    %23 = arith.mulf %20, %22 : vector<2x8xf32>
    %24 = arith.addf %16, %23 : vector<2x8xf32>
    %c0_15 = arith.constant 0 : index
    %c0_16 = arith.constant 0 : index
    %25 = vector.load %arg12[%c0_15, %c0_16] : memref<2x8xf32, #tpu.memory_space<vmem>>, vector<2x8xf32>
    tpu.vector_store %arg12[%c0_15, %c0_16], %24 {strides = array<i32>} : memref<2x8xf32, #tpu.memory_space<vmem>>, vector<2x8xf32>,
    %26 = arith.subf %24, %16 : vector<2x8xf32>
    %27 = arith.mulf %26, %26 : vector<2x8xf32>
    %cst_17 = arith.constant 0.000000e+00 : f32
    %28 = vector.broadcast %cst_17 : f32 to vector<2x8xf32>
    %29 = arith.subf %28, %17 : vector<2x8xf32>
    %30 = math.exp %29 : vector<2x8xf32>
    %31 = arith.mulf %27, %30 : vector<2x8xf32>
    %32 = arith.addf %31, %17 : vector<2x8xf32>
    %cst_18 = arith.constant -5.000000e-01 : f32
    %33 = vector.broadcast %cst_18 : f32 to vector<2x8xf32>
    %34 = arith.mulf %33, %32 : vector<2x8xf32>
    %35 = arith.mulf %24, %24 : vector<2x8xf32>
    %cst_19 = arith.constant -5.000000e-01 : f32
    %36 = vector.broadcast %cst_19 : f32 to vector<2x8xf32>
    %37 = arith.mulf %36, %35 : vector<2x8xf32>
    %38 = arith.subf %37, %34 : vector<2x8xf32>
    %cst_20 = arith.constant dense<0.000000e+00> : vector<2xf32>
    %39 = vector.multi_reduction <add>, %38, %cst_20 [1] : vector<2x8xf32> to vector<2xf32>
    %40 = vector.shape_cast %39 : vector<2xf32> to vector<2x1xf32>
    %cst_21 = arith.constant 0.000000e+00 : f32
    %41 = vector.broadcast %cst_21 : f32 to vector<2x1xf32>
    %42 = arith.subf %41, %40 : vector<2x1xf32>
    %cst_22 = arith.constant dense<0.000000e+00> : vector<1xf32>
    %43 = vector.multi_reduction <add>, %42, %cst_22 [0] : vector<2x1xf32> to vector<1xf32>
    %44 = vector.shape_cast %43 : vector<1xf32> to vector<1x1xf32>
    %cst_23 = arith.constant 5.000000e-01 : f32
    %45 = vector.broadcast %cst_23 : f32 to vector<1x1xf32>
    %46 = arith.mulf %44, %45 : vector<1x1xf32>
    %c0_24 = arith.constant 0 : index
    %c0_25 = arith.constant 0 : index
    %47 = vector.load %arg6[%c0_24, %c0_25] : memref<8x1024xf32, #tpu.memory_space<vmem>>, vector<8x1024xf32>
    %cst_26 = arith.constant dense<0.000000e+00> : vector<2x1024xf32>
    %48 = tpu.matmul %24, %47, %cst_26 {dimension_numbers = #tpu.dot_dimension_numbers<[1], [0], [0], [1], [0, 0, 1, 1], [], []>} : vector<2x8xf32>, vector<8x1024xf32>, vector<2x1024xf32> -> vector<2x1024xf32>
    %c0_27 = arith.constant 0 : index
    %c0_28 = arith.constant 0 : index
    %49 = vector.load %arg7[%c0_27, %c0_28] : memref<1x1024xf32, #tpu.memory_space<vmem>>, vector<1x1024xf32>
    %50 = vector.broadcast %49 : vector<1x1024xf32> to vector<2x1024xf32>
    %51 = arith.addf %48, %50 : vector<2x1024xf32>
    %cst_29 = arith.constant 0.000000e+00 : f32
    %52 = vector.broadcast %cst_29 : f32 to vector<2x1024xf32>
    %53 = arith.cmpf oge, %51, %52 : vector<2x1024xf32>
    %cst_30 = arith.constant 0.00999999977 : f32
    %54 = vector.broadcast %cst_30 : f32 to vector<2x1024xf32>
    %55 = arith.mulf %54, %51 : vector<2x1024xf32>
    %56 = arith.select %53, %51, %55 : vector<2x1024xi1>, vector<2x1024xf32>
    %c0_31 = arith.constant 0 : index
    %c0_32 = arith.constant 0 : index
    %57 = vector.load %arg8[%c0_31, %c0_32] : memref<1024x256xf32, #tpu.memory_space<vmem>>, vector<1024x256xf32>
    %cst_33 = arith.constant dense<0.000000e+00> : vector<2x256xf32>
    %58 = tpu.matmul %56, %57, %cst_33 {dimension_numbers = #tpu.dot_dimension_numbers<[1], [0], [0], [1], [0, 0, 1, 1], [], []>} : vector<2x1024xf32>, vector<1024x256xf32>, vector<2x256xf32> -> vector<2x256xf32>
    %c0_34 = arith.constant 0 : index
    %c0_35 = arith.constant 0 : index
    %59 = vector.load %arg9[%c0_34, %c0_35] : memref<1x256xf32, #tpu.memory_space<vmem>>, vector<1x256xf32>
    %60 = vector.broadcast %59 : vector<1x256xf32> to vector<2x256xf32>
    %61 = arith.addf %58, %60 : vector<2x256xf32>
    %cst_36 = arith.constant 0.000000e+00 : f32
    %62 = vector.broadcast %cst_36 : f32 to vector<2x256xf32>
    %63 = arith.cmpf oge, %61, %62 : vector<2x256xf32>
    %cst_37 = arith.constant 0.00999999977 : f32
    %64 = vector.broadcast %cst_37 : f32 to vector<2x256xf32>
    %65 = arith.mulf %64, %61 : vector<2x256xf32>
    %66 = arith.select %63, %61, %65 : vector<2x256xi1>, vector<2x256xf32>
    %c0_38 = arith.constant 0 : index
    %c0_39 = arith.constant 0 : index
    %67 = vector.load %arg10[%c0_38, %c0_39] : memref<256x512xf32, #tpu.memory_space<vmem>>, vector<256x512xf32>
    %cst_40 = arith.constant dense<0.000000e+00> : vector<2x512xf32>
    %68 = tpu.matmul %66, %67, %cst_40 {dimension_numbers = #tpu.dot_dimension_numbers<[1], [0], [0], [1], [0, 0, 1, 1], [], []>} : vector<2x256xf32>, vector<256x512xf32>, vector<2x512xf32> -> vector<2x512xf32>
    %c0_41 = arith.constant 0 : index
    %c0_42 = arith.constant 0 : index
    %69 = vector.load %arg11[%c0_41, %c0_42] : memref<1x512xf32, #tpu.memory_space<vmem>>, vector<1x512xf32>
    %70 = vector.broadcast %69 : vector<1x512xf32> to vector<2x512xf32>
    %71 = arith.addf %68, %70 : vector<2x512xf32>
    %72 = vector.extract_strided_slice %71 {offsets = [0, 0], sizes = [2, 256], strides = [1, 1]} : vector<2x512xf32> to vector<2x256xf32>
    %73 = vector.extract_strided_slice %71 {offsets = [0, 256], sizes = [2, 256], strides = [1, 1]} : vector<2x512xf32> to vector<2x256xf32>
    %74 = arith.subf %72, %0 : vector<2x256xf32>
    %75 = arith.mulf %74, %74 : vector<2x256xf32>
    %cst_43 = arith.constant 5.000000e-01 : f32
    %76 = vector.broadcast %cst_43 : f32 to vector<2x256xf32>
    %77 = arith.mulf %76, %75 : vector<2x256xf32>
    %cst_44 = arith.constant 0.000000e+00 : f32
    %78 = vector.broadcast %cst_44 : f32 to vector<2x256xf32>
    %79 = arith.subf %78, %73 : vector<2x256xf32>
    %80 = math.exp %79 : vector<2x256xf32>
    %81 = arith.mulf %77, %80 : vector<2x256xf32>
    %cst_45 = arith.constant 5.000000e-01 : f32
    %82 = vector.broadcast %cst_45 : f32 to vector<2x256xf32>
    %83 = arith.mulf %82, %73 : vector<2x256xf32>
    %84 = arith.addf %81, %83 : vector<2x256xf32>
    %cst_46 = arith.constant 0.918938517 : f32
    %85 = vector.broadcast %cst_46 : f32 to vector<2x256xf32>
    %86 = arith.addf %84, %85 : vector<2x256xf32>
    %cst_47 = arith.constant dense<0.000000e+00> : vector<2xf32>
    %87 = vector.multi_reduction <add>, %86, %cst_47 [1] : vector<2x256xf32> to vector<2xf32>
    %88 = vector.shape_cast %87 : vector<2xf32> to vector<2x1xf32>
    %cst_48 = arith.constant dense<0.000000e+00> : vector<1xf32>
    %89 = vector.multi_reduction <add>, %88, %cst_48 [0] : vector<2x1xf32> to vector<1xf32>
    %90 = vector.shape_cast %89 : vector<1xf32> to vector<1x1xf32>
    %cst_49 = arith.constant 5.000000e-01 : f32
    %91 = vector.broadcast %cst_49 : f32 to vector<1x1xf32>
    %92 = arith.mulf %90, %91 : vector<1x1xf32>
    %c0_50 = arith.constant 0 : index
    %c0_51 = arith.constant 0 : index
    %93 = vector.load %arg15[%c0_50, %c0_51] : memref<1x1xf32, #tpu.memory_space<vmem>>, vector<1x1xf32>
    tpu.vector_store %arg15[%c0_50, %c0_51], %46 {strides = array<i32>} : memref<1x1xf32, #tpu.memory_space<vmem>>, vector<1x1xf32>,
    %c0_52 = arith.constant 0 : index
    %c0_53 = arith.constant 0 : index
    %94 = vector.load %arg14[%c0_52, %c0_53] : memref<1x1xf32, #tpu.memory_space<vmem>>, vector<1x1xf32>
    tpu.vector_store %arg14[%c0_52, %c0_53], %92 {strides = array<i32>} : memref<1x1xf32, #tpu.memory_space<vmem>>, vector<1x1xf32>,
    %cst_54 = arith.constant 1.000000e+00 : f32
    %95 = vector.broadcast %cst_54 : f32 to vector<1x1xf32>
    %96 = arith.mulf %95, %46 : vector<1x1xf32>
    %97 = arith.addf %92, %96 : vector<1x1xf32>
    %c0_55 = arith.constant 0 : index
    %c0_56 = arith.constant 0 : index
    %98 = vector.load %arg13[%c0_55, %c0_56] : memref<1x1xf32, #tpu.memory_space<vmem>>, vector<1x1xf32>
    tpu.vector_store %arg13[%c0_55, %c0_56], %97 {strides = array<i32>} : memref<1x1xf32, #tpu.memory_space<vmem>>, vector<1x1xf32>,
    return
  }
}

</mosaic_0001>

<llo_original>
// kernel: vae_forward.1
$region0: #{vae_forward.1}
  #allocation0 [shape = 'u32[]', space=smem, size = 0x4, offset = 0x4, fixed_abs, tag = 'smem constant byte address 0x4 - core index']
  #allocation1 [shape = 'u32[144,128]{1,0:T(1,128)}', space=vmem, size = 0x12000, scoped, tag = 'internal scratch']
  %s0 = inlined_call_operand.vmem [shape: f32[2,256], index: 0, kind: input, shape index: {}]
  %s1 = inlined_call_operand.vmem [shape: f32[1,8], index: 1, kind: input, shape index: {}]
  %s2 = inlined_call_operand.hbm [shape: f32[256,1024], index: 2, kind: input, shape index: {}]
  %s3 = inlined_call_operand.vmem [shape: f32[1,1024], index: 3, kind: input, shape index: {}]
  %s4 = inlined_call_operand.vmem [shape: f32[1024,16], index: 4, kind: input, shape index: {}]
  %s5 = inlined_call_operand.vmem [shape: f32[1,16], index: 5, kind: input, shape index: {}]
  %s6 = inlined_call_operand.vmem [shape: f32[8,1024], index: 6, kind: input, shape index: {}]
  %s7 = inlined_call_operand.vmem [shape: f32[1,1024], index: 7, kind: input, shape index: {}]
  %s8 = inlined_call_operand.hbm [shape: f32[1024,256], index: 8, kind: input, shape index: {}]
  %s9 = inlined_call_operand.vmem [shape: f32[1,256], index: 9, kind: input, shape index: {}]
  %s10 = inlined_call_operand.vmem [shape: f32[256,512], index: 10, kind: input, shape index: {}]
  %s11 = inlined_call_operand.vmem [shape: f32[1,512], index: 11, kind: input, shape index: {}]
  %s12 = inlined_call_operand.hbm [shape: f32[2,8], index: 12, kind: output, shape index: {0}]
  %s13 = inlined_call_operand.hbm [shape: f32[1,1], index: 13, kind: output, shape index: {1}]
  %s14 = inlined_call_operand.hbm [shape: f32[1,1], index: 14, kind: output, shape index: {2}]
  %s15 = inlined_call_operand.hbm [shape: f32[1,1], index: 15, kind: output, shape index: {3}]
  %16 = xla_tuple %s12, %s13, %s14, %s15
  %s17 = sld [smem:[#allocation0]]
  $region90: #{vae_forward.1} parent=0
    _
  %s19 = ssub.s32 1, %s17
  %s20 = scalar_select 0, %s19, %s17
  $region1: #{vae_forward.1} parent=0
    #allocation2 [shape = 'u8[1048576]{0}', space=vmem, size = 0x100000, scoped, tag = 'input window, operand 2, single buffered']
    #allocation3 [shape = 's32[1]{0}', space=sflag, size = 0x4, scoped, tag = 'scoped memory for vae_forward.1']
    #allocation4 [shape = 's32[1]{0}', space=sflag, size = 0x4, scoped, tag = 'scoped memory for vae_forward.1']
    #allocation5 [shape = 'u8[1048576]{0}', space=vmem, size = 0x100000, scoped, tag = 'input window, operand 8, single buffered']
    #allocation6 [shape = 's32[1]{0}', space=sflag, size = 0x4, scoped, tag = 'scoped memory for vae_forward.1']
    #allocation7 [shape = 'u8[1024]{0}', space=vmem, size = 0x400, scoped, tag = 'output window, operand 0, single buffered']
    #allocation8 [shape = 'u8[512]{0}', space=vmem, size = 0x400, scoped, tag = 'output window, operand 1, single buffered']
    #allocation9 [shape = 's32[1]{0}', space=sflag, size = 0x4, scoped, tag = 'scoped memory for vae_forward.1']
    #allocation10 [shape = 'u8[512]{0}', space=vmem, size = 0x400, scoped, tag = 'output window, operand 2, single buffered']
    #allocation11 [shape = 'u8[512]{0}', space=vmem, size = 0x400, scoped, tag = 'output window, operand 3, single buffered']
    #allocation12 [shape = 's32[1]{0}', space=sflag, size = 0x4, scoped, tag = 'scoped memory for vae_forward.1']
    %21 = vsyncpa [#allocation3], 0
    %22 = vsyncpa [#allocation6], 0
    %23 = vsyncpa [#allocation4], 0
    %24 = vsyncpa [#allocation9], 0
    %25 = vsyncpa [#allocation12], 0
    // Predicated region
    $region2: #{vae_forward.1} parent=1 // pred_check
      _
    $region3: #{vae_forward.1} parent=1 // pred_check_branch
      %27 = sbr.rel (0) target = $region5
    $region4: #{vae_forward.1} parent=1 // pred_region
      _
    $region5: #{vae_forward.1} parent=1 // pred_fallthru
      _
    // Predicated region
    $region6: #{vae_forward.1} parent=1 // pred_check
      _
    $region7: #{vae_forward.1} parent=1 // pred_check_branch
      %29 = sbr.rel (0) target = $region9
    $region8: #{vae_forward.1} parent=1 // pred_region
      _
    $region9: #{vae_forward.1} parent=1 // pred_fallthru
      _
    // Predicated region
    $region10: #{vae_forward.1} parent=1 // pred_check
      _
    $region11: #{vae_forward.1} parent=1 // pred_check_branch
      %31 = sbr.rel (0) target = $region13
    $region12: #{vae_forward.1} parent=1 // pred_region
      %s33 = ssub.s32 32768, 32768
      %34 = vsyncadd [#allocation3], %s33
      %s35 = sshll.u32 [#allocation2], 4
      %s36 = int_to_ptr.vmem [resolvable:$true] %s35
      %41 = dma.hbm_to_vmem [thread:$0]  %s2, 32768, %s36, [#allocation3], 1024, 1024, 64
    $region13: #{vae_forward.1} parent=1 // pred_fallthru
      _
    // Predicated region
    $region14: #{vae_forward.1} parent=1 // pred_check
      _
    $region15: #{vae_forward.1} parent=1 // pred_check_branch
      %43 = sbr.rel (0) target = $region17
    $region16: #{vae_forward.1} parent=1 // pred_region
      _
    $region17: #{vae_forward.1} parent=1 // pred_fallthru
      _
    // Predicated region
    $region18: #{vae_forward.1} parent=1 // pred_check
      _
    $region19: #{vae_forward.1} parent=1 // pred_check_branch
      %45 = sbr.rel (0) target = $region21
    $region20: #{vae_forward.1} parent=1 // pred_region
      _
    $region21: #{vae_forward.1} parent=1 // pred_fallthru
      _
    // Predicated region
    $region22: #{vae_forward.1} parent=1 // pred_check
      _
    $region23: #{vae_forward.1} parent=1 // pred_check_branch
      %47 = sbr.rel (0) target = $region25
    $region24: #{vae_forward.1} parent=1 // pred_region
      _
    $region25: #{vae_forward.1} parent=1 // pred_fallthru
      _
    // Predicated region
    $region26: #{vae_forward.1} parent=1 // pred_check
      _
    $region27: #{vae_forward.1} parent=1 // pred_check_branch
      %49 = sbr.rel (0) target = $region29
    $region28: #{vae_forward.1} parent=1 // pred_region
      _
    $region29: #{vae_forward.1} parent=1 // pred_fallthru
      _
    // Predicated region
    $region30: #{vae_forward.1} parent=1 // pred_check
      _
    $region31: #{vae_forward.1} parent=1 // pred_check_branch
      %51 = sbr.rel (0) target = $region33
    $region32: #{vae_forward.1} parent=1 // pred_region
      _
    $region33: #{vae_forward.1} parent=1 // pred_fallthru
      _
    // Predicated region
    $region34: #{vae_forward.1} parent=1 // pred_check
      _
    $region35: #{vae_forward.1} parent=1 // pred_check_branch
      %53 = sbr.rel (0) target = $region37
    $region36: #{vae_forward.1} parent=1 // pred_region
      %s55 = ssub.s32 32768, 32768
      %56 = vsyncadd [#allocation6], %s55
      %s57 = sshll.u32 [#allocation5], 4
      %s58 = int_to_ptr.vmem [resolvable:$true] %s57
      %63 = dma.hbm_to_vmem [thread:$0]  %s8, 32768, %s58, [#allocation6], 256, 256, 16
    $region37: #{vae_forward.1} parent=1 // pred_fallthru
      _
    // Predicated region
    $region38: #{vae_forward.1} parent=1 // pred_check
      _
    $region39: #{vae_forward.1} parent=1 // pred_check_branch
      %65 = sbr.rel (0) target = $region41
    $region40: #{vae_forward.1} parent=1 // pred_region
      _
    $region41: #{vae_forward.1} parent=1 // pred_fallthru
      _
    // Predicated region
    $region42: #{vae_forward.1} parent=1 // pred_check
      _
    $region43: #{vae_forward.1} parent=1 // pred_check_branch
      %67 = sbr.rel (0) target = $region45
    $region44: #{vae_forward.1} parent=1 // pred_region
      _
    $region45: #{vae_forward.1} parent=1 // pred_fallthru
      _
    // Predicated region
    $region46: #{vae_forward.1} parent=1 // pred_check
      _
    $region47: #{vae_forward.1} parent=1 // pred_check_branch
      %69 = sbr.rel (0) target = $region49
    $region48: #{vae_forward.1} parent=1 // pred_region
      _
    $region49: #{vae_forward.1} parent=1 // pred_fallthru
      _
    // Predicated region
    $region50: #{vae_forward.1} parent=1 // pred_check
      _
    $region51: #{vae_forward.1} parent=1 // pred_check_branch
      %71 = sbr.rel (0) target = $region53
    $region52: #{vae_forward.1} parent=1 // pred_region
      %72 = dma.done [#allocation3], 32768
    $region53: #{vae_forward.1} parent=1 // pred_fallthru
      _
    // Predicated region
    $region54: #{vae_forward.1} parent=1 // pred_check
      _
    $region55: #{vae_forward.1} parent=1 // pred_check_branch
      %74 = sbr.rel (0) target = $region57
    $region56: #{vae_forward.1} parent=1 // pred_region
      %75 = dma.done [#allocation6], 32768
    $region57: #{vae_forward.1} parent=1 // pred_fallthru
      _
    %v76 = vld [vmem:[%s0] sm:$0xf]
    %v77 = vld [vmem:[#allocation2] sm:$0xff]
    %v78 = vld [vmem:[#allocation2 + $0x8] sm:$0xff]
    %v79 = vld [vmem:[#allocation2 + $0x10] sm:$0xff]
    %v80 = vld [vmem:[#allocation2 + $0x18] sm:$0xff]
    %v81 = vld [vmem:[#allocation2 + $0x20] sm:$0xff]
    %v82 = vld [vmem:[#allocation2 + $0x28] sm:$0xff]
    %v83 = vld [vmem:[#allocation2 + $0x30] sm:$0xff]
    %v84 = vld [vmem:[#allocation2 + $0x38] sm:$0xff]
    %v85 = vld [vmem:[#allocation2 + $0x40] sm:$0xff]
    %v86 = vld [vmem:[#allocation2 + $0x48] sm:$0xff]
    %v87 = vld [vmem:[#allocation2 + $0x50] sm:$0xff]
    %v88 = vld [vmem:[#allocation2 + $0x58] sm:$0xff]
    %v89 = vld [vmem:[#allocation2 + $0x60] sm:$0xff]
    %v90 = vld [vmem:[#allocation2 + $0x68] sm:$0xff]
    %v91 = vld [vmem:[#allocation2 + $0x70] sm:$0xff]
    %v92 = vld [vmem:[#allocation2 + $0x78] sm:$0xff]
    %v93 = vld [vmem:[#allocation2 + $0x80] sm:$0xff]
    %v94 = vld [vmem:[#allocation2 + $0x88] sm:$0xff]
    %v95 = vld [vmem:[#allocation2 + $0x90] sm:$0xff]
    %v96 = vld [vmem:[#allocation2 + $0x98] sm:$0xff]
    %v97 = vld [vmem:[#allocation2 + $0xa0] sm:$0xff]
    %v98 = vld [vmem:[#allocation2 + $0xa8] sm:$0xff]
    %v99 = vld [vmem:[#allocation2 + $0xb0] sm:$0xff]
    %v100 = vld [vmem:[#allocation2 + $0xb8] sm:$0xff]
    %v101 = vld [vmem:[#allocation2 + $0xc0] sm:$0xff]
    %v102 = vld [vmem:[#allocation2 + $0xc8] sm:$0xff]
    %v103 = vld [vmem:[#allocation2 + $0xd0] sm:$0xff]
    %v104 = vld [vmem:[#allocation2 + $0xd8] sm:$0xff]
    %v105 = vld [vmem:[#allocation2 + $0xe0] sm:$0xff]
    %v106 = vld [vmem:[#allocation2 + $0xe8] sm:$0xff]
    %v107 = vld [vmem:[#allocation2 + $0xf0] sm:$0xff]
    %v108 = vld [vmem:[#allocation2 + $0xf8] sm:$0xff]
    %v109 = vld [vmem:[#allocation2 + $0x100] sm:$0xff]
    %v110 = vld [vmem:[#allocation2 + $0x108] sm:$0xff]
    %v111 = vld [vmem:[#allocation2 + $0x110] sm:$0xff]
    %v112 = vld [vmem:[#allocation2 + $0x118] sm:$0xff]
    %v113 = vld [vmem:[#allocation2 + $0x120] sm:$0xff]
    %v114 = vld [vmem:[#allocation2 + $0x128] sm:$0xff]
    %v115 = vld [vmem:[#allocation2 + $0x130] sm:$0xff]
    %v116 = vld [vmem:[#allocation2 + $0x138] sm:$0xff]
    %v117 = vld [vmem:[#allocation2 + $0x140] sm:$0xff]
    %v118 = vld [vmem:[#allocation2 + $0x148] sm:$0xff]
    %v119 = vld [vmem:[#allocation2 + $0x150] sm:$0xff]
    %v120 = vld [vmem:[#allocation2 + $0x158] sm:$0xff]
    %v121 = vld [vmem:[#allocation2 + $0x160] sm:$0xff]
    %v122 = vld [vmem:[#allocation2 + $0x168] sm:$0xff]
    %v123 = vld [vmem:[#allocation2 + $0x170] sm:$0xff]
    %v124 = vld [vmem:[#allocation2 + $0x178] sm:$0xff]
    %v125 = vld [vmem:[#allocation2 + $0x180] sm:$0xff]
    %v126 = vld [vmem:[#allocation2 + $0x188] sm:$0xff]
    %v127 = vld [vmem:[#allocation2 + $0x190] sm:$0xff]
    %v128 = vld [vmem:[#allocation2 + $0x198] sm:$0xff]
    %v129 = vld [vmem:[#allocation2 + $0x1a0] sm:$0xff]
    %v130 = vld [vmem:[#allocation2 + $0x1a8] sm:$0xff]
    %v131 = vld [vmem:[#allocation2 + $0x1b0] sm:$0xff]
    %v132 = vld [vmem:[#allocation2 + $0x1b8] sm:$0xff]
    %v133 = vld [vmem:[#allocation2 + $0x1c0] sm:$0xff]
    %v134 = vld [vmem:[#allocation2 + $0x1c8] sm:$0xff]
    %v135 = vld [vmem:[#allocation2 + $0x1d0] sm:$0xff]
    %v136 = vld [vmem:[#allocation2 + $0x1d8] sm:$0xff]
    %v137 = vld [vmem:[#allocation2 + $0x1e0] sm:$0xff]
    %v138 = vld [vmem:[#allocation2 + $0x1e8] sm:$0xff]
    %v139 = vld [vmem:[#allocation2 + $0x1f0] sm:$0xff]
    %v140 = vld [vmem:[#allocation2 + $0x1f8] sm:$0xff]
    %v141 = vld [vmem:[#allocation2 + $0x200] sm:$0xff]
    %v142 = vld [vmem:[#allocation2 + $0x208] sm:$0xff]
    %v143 = vld [vmem:[#allocation2 + $0x210] sm:$0xff]
    %v144 = vld [vmem:[#allocation2 + $0x218] sm:$0xff]
    %v145 = vld [vmem:[#allocation2 + $0x220] sm:$0xff]
    %v146 = vld [vmem:[#allocation2 + $0x228] sm:$0xff]
    %v147 = vld [vmem:[#allocation2 + $0x230] sm:$0xff]
    %v148 = vld [vmem:[#allocation2 + $0x238] sm:$0xff]
    %v149 = vld [vmem:[#allocation2 + $0x240] sm:$0xff]
    %v150 = vld [vmem:[#allocation2 + $0x248] sm:$0xff]
    %v151 = vld [vmem:[#allocation2 + $0x250] sm:$0xff]
    %v152 = vld [vmem:[#allocation2 + $0x258] sm:$0xff]
    %v153 = vld [vmem:[#allocation2 + $0x260] sm:$0xff]
    %v154 = vld [vmem:[#allocation2 + $0x268] sm:$0xff]
    %v155 = vld [vmem:[#allocation2 + $0x270] sm:$0xff]
    %v156 = vld [vmem:[#allocation2 + $0x278] sm:$0xff]
    %v157 = vld [vmem:[#allocation2 + $0x280] sm:$0xff]
    %v158 = vld [vmem:[#allocation2 + $0x288] sm:$0xff]
    %v159 = vld [vmem:[#allocation2 + $0x290] sm:$0xff]
    %v160 = vld [vmem:[#allocation2 + $0x298] sm:$0xff]
    %v161 = vld [vmem:[#allocation2 + $0x2a0] sm:$0xff]
    %v162 = vld [vmem:[#allocation2 + $0x2a8] sm:$0xff]
    %v163 = vld [vmem:[#allocation2 + $0x2b0] sm:$0xff]
    %v164 = vld [vmem:[#allocation2 + $0x2b8] sm:$0xff]
    %v165 = vld [vmem:[#allocation2 + $0x2c0] sm:$0xff]
    %v166 = vld [vmem:[#allocation2 + $0x2c8] sm:$0xff]
    %v167 = vld [vmem:[#allocation2 + $0x2d0] sm:$0xff]
    %v168 = vld [vmem:[#allocation2 + $0x2d8] sm:$0xff]
    %v169 = vld [vmem:[#allocation2 + $0x2e0] sm:$0xff]
    %v170 = vld [vmem:[#allocation2 + $0x2e8] sm:$0xff]
    %v171 = vld [vmem:[#allocation2 + $0x2f0] sm:$0xff]
    %v172 = vld [vmem:[#allocation2 + $0x2f8] sm:$0xff]
    %v173 = vld [vmem:[#allocation2 + $0x300] sm:$0xff]
    %v174 = vld [vmem:[#allocation2 + $0x308] sm:$0xff]
    %v175 = vld [vmem:[#allocation2 + $0x310] sm:$0xff]
    %v176 = vld [vmem:[#allocation2 + $0x318] sm:$0xff]
    %v177 = vld [vmem:[#allocation2 + $0x320] sm:$0xff]
    %v178 = vld [vmem:[#allocation2 + $0x328] sm:$0xff]
    %v179 = vld [vmem:[#allocation2 + $0x330] sm:$0xff]
    %v180 = vld [vmem:[#allocation2 + $0x338] sm:$0xff]
    %v181 = vld [vmem:[#allocation2 + $0x340] sm:$0xff]
    %v182 = vld [vmem:[#allocation2 + $0x348] sm:$0xff]
    %v183 = vld [vmem:[#allocation2 + $0x350] sm:$0xff]
    %v184 = vld [vmem:[#allocation2 + $0x358] sm:$0xff]
    %v185 = vld [vmem:[#allocation2 + $0x360] sm:$0xff]
    %v186 = vld [vmem:[#allocation2 + $0x368] sm:$0xff]
    %v187 = vld [vmem:[#allocation2 + $0x370] sm:$0xff]
    %v188 = vld [vmem:[#allocation2 + $0x378] sm:$0xff]
    %v189 = vld [vmem:[#allocation2 + $0x380] sm:$0xff]
    %v190 = vld [vmem:[#allocation2 + $0x388] sm:$0xff]
    %v191 = vld [vmem:[#allocation2 + $0x390] sm:$0xff]
    %v192 = vld [vmem:[#allocation2 + $0x398] sm:$0xff]
    %v193 = vld [vmem:[#allocation2 + $0x3a0] sm:$0xff]
    %v194 = vld [vmem:[#allocation2 + $0x3a8] sm:$0xff]
    %v195 = vld [vmem:[#allocation2 + $0x3b0] sm:$0xff]
    %v196 = vld [vmem:[#allocation2 + $0x3b8] sm:$0xff]
    %v197 = vld [vmem:[#allocation2 + $0x3c0] sm:$0xff]
    %v198 = vld [vmem:[#allocation2 + $0x3c8] sm:$0xff]
    %v199 = vld [vmem:[#allocation2 + $0x3d0] sm:$0xff]
    %v200 = vld [vmem:[#allocation2 + $0x3d8] sm:$0xff]
    %v201 = vld [vmem:[#allocation2 + $0x3e0] sm:$0xff]
    %v202 = vld [vmem:[#allocation2 + $0x3e8] sm:$0xff]
    %v203 = vld [vmem:[#allocation2 + $0x3f0] sm:$0xff]
    %v204 = vld [vmem:[#allocation2 + $0x3f8] sm:$0xff]
    %v205 = vld [vmem:[#allocation2 + $0x400] sm:$0xff]
    %v206 = vld [vmem:[#allocation2 + $0x408] sm:$0xff]
    %v207 = vld [vmem:[#allocation2 + $0x410] sm:$0xff]
    %v208 = vld [vmem:[#allocation2 + $0x418] sm:$0xff]
    %v209 = vld [vmem:[#allocation2 + $0x420] sm:$0xff]
    %v210 = vld [vmem:[#allocation2 + $0x428] sm:$0xff]
    %v211 = vld [vmem:[#allocation2 + $0x430] sm:$0xff]
    %v212 = vld [vmem:[#allocation2 + $0x438] sm:$0xff]
    %v213 = vld [vmem:[#allocation2 + $0x440] sm:$0xff]
    %v214 = vld [vmem:[#allocation2 + $0x448] sm:$0xff]
    %v215 = vld [vmem:[#allocation2 + $0x450] sm:$0xff]
    %v216 = vld [vmem:[#allocation2 + $0x458] sm:$0xff]
    %v217 = vld [vmem:[#allocation2 + $0x460] sm:$0xff]
    %v218 = vld [vmem:[#allocation2 + $0x468] sm:$0xff]
    %v219 = vld [vmem:[#allocation2 + $0x470] sm:$0xff]
    %v220 = vld [vmem:[#allocation2 + $0x478] sm:$0xff]
    %v221 = vld [vmem:[#allocation2 + $0x480] sm:$0xff]
    %v222 = vld [vmem:[#allocation2 + $0x488] sm:$0xff]
    %v223 = vld [vmem:[#allocation2 + $0x490] sm:$0xff]
    %v224 = vld [vmem:[#allocation2 + $0x498] sm:$0xff]
    %v225 = vld [vmem:[#allocation2 + $0x4a0] sm:$0xff]
    %v226 = vld [vmem:[#allocation2 + $0x4a8] sm:$0xff]
    %v227 = vld [vmem:[#allocation2 + $0x4b0] sm:$0xff]
    %v228 = vld [vmem:[#allocation2 + $0x4b8] sm:$0xff]
    %v229 = vld [vmem:[#allocation2 + $0x4c0] sm:$0xff]
    %v230 = vld [vmem:[#allocation2 + $0x4c8] sm:$0xff]
    %v231 = vld [vmem:[#allocation2 + $0x4d0] sm:$0xff]
    %v232 = vld [vmem:[#allocation2 + $0x4d8] sm:$0xff]
    %v233 = vld [vmem:[#allocation2 + $0x4e0] sm:$0xff]
    %v234 = vld [vmem:[#allocation2 + $0x4e8] sm:$0xff]
    %v235 = vld [vmem:[#allocation2 + $0x4f0] sm:$0xff]
    %v236 = vld [vmem:[#allocation2 + $0x4f8] sm:$0xff]
    %v237 = vld [vmem:[#allocation2 + $0x500] sm:$0xff]
    %v238 = vld [vmem:[#allocation2 + $0x508] sm:$0xff]
    %v239 = vld [vmem:[#allocation2 + $0x510] sm:$0xff]
    %v240 = vld [vmem:[#allocation2 + $0x518] sm:$0xff]
    %v241 = vld [vmem:[#allocation2 + $0x520] sm:$0xff]
    %v242 = vld [vmem:[#allocation2 + $0x528] sm:$0xff]
    %v243 = vld [vmem:[#allocation2 + $0x530] sm:$0xff]
    %v244 = vld [vmem:[#allocation2 + $0x538] sm:$0xff]
    %v245 = vld [vmem:[#allocation2 + $0x540] sm:$0xff]
    %v246 = vld [vmem:[#allocation2 + $0x548] sm:$0xff]
    %v247 = vld [vmem:[#allocation2 + $0x550] sm:$0xff]
    %v248 = vld [vmem:[#allocation2 + $0x558] sm:$0xff]
    %v249 = vld [vmem:[#allocation2 + $0x560] sm:$0xff]
    %v250 = vld [vmem:[#allocation2 + $0x568] sm:$0xff]
    %v251 = vld [vmem:[#allocation2 + $0x570] sm:$0xff]
    %v252 = vld [vmem:[#allocation2 + $0x578] sm:$0xff]
    %v253 = vld [vmem:[#allocation2 + $0x580] sm:$0xff]
    %v254 = vld [vmem:[#allocation2 + $0x588] sm:$0xff]
    %v255 = vld [vmem:[#allocation2 + $0x590] sm:$0xff]
    %v256 = vld [vmem:[#allocation2 + $0x598] sm:$0xff]
    %v257 = vld [vmem:[#allocation2 + $0x5a0] sm:$0xff]
    %v258 = vld [vmem:[#allocation2 + $0x5a8] sm:$0xff]
    %v259 = vld [vmem:[#allocation2 + $0x5b0] sm:$0xff]
    %v260 = vld [vmem:[#allocation2 + $0x5b8] sm:$0xff]
    %v261 = vld [vmem:[#allocation2 + $0x5c0] sm:$0xff]
    %v262 = vld [vmem:[#allocation2 + $0x5c8] sm:$0xff]
    %v263 = vld [vmem:[#allocation2 + $0x5d0] sm:$0xff]
    %v264 = vld [vmem:[#allocation2 + $0x5d8] sm:$0xff]
    %v265 = vld [vmem:[#allocation2 + $0x5e0] sm:$0xff]
    %v266 = vld [vmem:[#allocation2 + $0x5e8] sm:$0xff]
    %v267 = vld [vmem:[#allocation2 + $0x5f0] sm:$0xff]
    %v268 = vld [vmem:[#allocation2 + $0x5f8] sm:$0xff]
    %v269 = vld [vmem:[#allocation2 + $0x600] sm:$0xff]
    %v270 = vld [vmem:[#allocation2 + $0x608] sm:$0xff]
    %v271 = vld [vmem:[#allocation2 + $0x610] sm:$0xff]
    %v272 = vld [vmem:[#allocation2 + $0x618] sm:$0xff]
    %v273 = vld [vmem:[#allocation2 + $0x620] sm:$0xff]
    %v274 = vld [vmem:[#allocation2 + $0x628] sm:$0xff]
    %v275 = vld [vmem:[#allocation2 + $0x630] sm:$0xff]
    %v276 = vld [vmem:[#allocation2 + $0x638] sm:$0xff]
    %v277 = vld [vmem:[#allocation2 + $0x640] sm:$0xff]
    %v278 = vld [vmem:[#allocation2 + $0x648] sm:$0xff]
    %v279 = vld [vmem:[#allocation2 + $0x650] sm:$0xff]
    %v280 = vld [vmem:[#allocation2 + $0x658] sm:$0xff]
    %v281 = vld [vmem:[#allocation2 + $0x660] sm:$0xff]
    %v282 = vld [vmem:[#allocation2 + $0x668] sm:$0xff]
    %v283 = vld [vmem:[#allocation2 + $0x670] sm:$0xff]
    %v284 = vld [vmem:[#allocation2 + $0x678] sm:$0xff]
    %v285 = vld [vmem:[#allocation2 + $0x680] sm:$0xff]
    %v286 = vld [vmem:[#allocation2 + $0x688] sm:$0xff]
    %v287 = vld [vmem:[#allocation2 + $0x690] sm:$0xff]
    %v288 = vld [vmem:[#allocation2 + $0x698] sm:$0xff]
    %v289 = vld [vmem:[#allocation2 + $0x6a0] sm:$0xff]
    %v290 = vld [vmem:[#allocation2 + $0x6a8] sm:$0xff]
    %v291 = vld [vmem:[#allocation2 + $0x6b0] sm:$0xff]
    %v292 = vld [vmem:[#allocation2 + $0x6b8] sm:$0xff]
    %v293 = vld [vmem:[#allocation2 + $0x6c0] sm:$0xff]
    %v294 = vld [vmem:[#allocation2 + $0x6c8] sm:$0xff]
    %v295 = vld [vmem:[#allocation2 + $0x6d0] sm:$0xff]
    %v296 = vld [vmem:[#allocation2 + $0x6d8] sm:$0xff]
    %v297 = vld [vmem:[#allocation2 + $0x6e0] sm:$0xff]
    %v298 = vld [vmem:[#allocation2 + $0x6e8] sm:$0xff]
    %v299 = vld [vmem:[#allocation2 + $0x6f0] sm:$0xff]
    %v300 = vld [vmem:[#allocation2 + $0x6f8] sm:$0xff]
    %v301 = vld [vmem:[#allocation2 + $0x700] sm:$0xff]
    %v302 = vld [vmem:[#allocation2 + $0x708] sm:$0xff]
    %v303 = vld [vmem:[#allocation2 + $0x710] sm:$0xff]
    %v304 = vld [vmem:[#allocation2 + $0x718] sm:$0xff]
    %v305 = vld [vmem:[#allocation2 + $0x720] sm:$0xff]
    %v306 = vld [vmem:[#allocation2 + $0x728] sm:$0xff]
    %v307 = vld [vmem:[#allocation2 + $0x730] sm:$0xff]
    %v308 = vld [vmem:[#allocation2 + $0x738] sm:$0xff]
    %v309 = vld [vmem:[#allocation2 + $0x740] sm:$0xff]
    %v310 = vld [vmem:[#allocation2 + $0x748] sm:$0xff]
    %v311 = vld [vmem:[#allocation2 + $0x750] sm:$0xff]
    %v312 = vld [vmem:[#allocation2 + $0x758] sm:$0xff]
    %v313 = vld [vmem:[#allocation2 + $0x760] sm:$0xff]
    %v314 = vld [vmem:[#allocation2 + $0x768] sm:$0xff]
    %v315 = vld [vmem:[#allocation2 + $0x770] sm:$0xff]
    %v316 = vld [vmem:[#allocation2 + $0x778] sm:$0xff]
    %v317 = vld [vmem:[#allocation2 + $0x780] sm:$0xff]
    %v318 = vld [vmem:[#allocation2 + $0x788] sm:$0xff]
    %v319 = vld [vmem:[#allocation2 + $0x790] sm:$0xff]
    %v320 = vld [vmem:[#allocation2 + $0x798] sm:$0xff]
    %v321 = vld [vmem:[#allocation2 + $0x7a0] sm:$0xff]
    %v322 = vld [vmem:[#allocation2 + $0x7a8] sm:$0xff]
    %v323 = vld [vmem:[#allocation2 + $0x7b0] sm:$0xff]
    %v324 = vld [vmem:[#allocation2 + $0x7b8] sm:$0xff]
    %v325 = vld [vmem:[#allocation2 + $0x7c0] sm:$0xff]
    %v326 = vld [vmem:[#allocation2 + $0x7c8] sm:$0xff]
    %v327 = vld [vmem:[#allocation2 + $0x7d0] sm:$0xff]
    %v328 = vld [vmem:[#allocation2 + $0x7d8] sm:$0xff]
    %v329 = vld [vmem:[#allocation2 + $0x7e0] sm:$0xff]
    %v330 = vld [vmem:[#allocation2 + $0x7e8] sm:$0xff]
    %v331 = vld [vmem:[#allocation2 + $0x7f0] sm:$0xff]
    %v332 = vld [vmem:[#allocation2 + $0x7f8] sm:$0xff]
    %v333 = vld [vmem:[%s3] sm:$0xff]
    %v335 = vlaneseq
    %v336 = vshrl.u32 %v335, 7
    %v337 = vsub.s32 0, %v336
    %v338 = vrot.slane %v333, %v337
    %v339 = vlaneseq
    %v340 = vshrl.u32 %v339, 7
    %v341 = vsub.s32 1, %v340
    %v342 = vrot.slane %v333, %v341
    %v343 = vlaneseq
    %v344 = vshrl.u32 %v343, 7
    %v345 = vsub.s32 2, %v344
    %v346 = vrot.slane %v333, %v345
    %v347 = vlaneseq
    %v348 = vshrl.u32 %v347, 7
    %v349 = vsub.s32 3, %v348
    %v350 = vrot.slane %v333, %v349
    %v351 = vlaneseq
    %v352 = vshrl.u32 %v351, 7
    %v353 = vsub.s32 4, %v352
    %v354 = vrot.slane %v333, %v353
    %v355 = vlaneseq
    %v356 = vshrl.u32 %v355, 7
    %v357 = vsub.s32 5, %v356
    %v358 = vrot.slane %v333, %v357
    %v359 = vlaneseq
    %v360 = vshrl.u32 %v359, 7
    %v361 = vsub.s32 6, %v360
    %v362 = vrot.slane %v333, %v361
    %v363 = vlaneseq
    %v364 = vshrl.u32 %v363, 7
    %v365 = vsub.s32 7, %v364
    %v366 = vrot.slane %v333, %v365
    %v377 = vunpack.c.l.s4 1983009808
    %v378 = vunpack.c.0.s8 %v377
    %v379 = vlaneseq
    %v380 = vshrl.u32 %v379, 7
    %v381 = vsub.s32 %v378, %v380
    %v382 = vrot.slane %v76, %v381
    %v383 = vcombine.high %v382, %v382
    %386 = vmatprep.subr.mxu0 %v78
    %387 = vmatpush1.msra.mxu0 %v77
    %388 = vmatprep.subr.mxu0 %v86
    %389 = vmatpush1.msra.mxu0 %v85
    %390 = vmatprep.subr.mxu0 %v94
    %391 = vmatpush1.msra.mxu0 %v93
    %392 = vmatprep.subr.mxu0 %v102
    %393 = vmatpush1.msra.mxu0 %v101
    %394 = vmatprep.subr.mxu0 %v110
    %395 = vmatpush1.msra.mxu0 %v109
    %396 = vmatprep.subr.mxu0 %v118
    %397 = vmatpush1.msra.mxu0 %v117
    %398 = vmatprep.subr.mxu0 %v126
    %399 = vmatpush1.msra.mxu0 %v125
    %400 = vmatprep.subr.mxu0 %v134
    %401 = vmatpush1.msra.mxu0 %v133
    %402 = vmatprep.subr.mxu0 %v142
    %403 = vmatpush1.msra.mxu0 %v141
    %404 = vmatprep.subr.mxu0 %v150
    %405 = vmatpush1.msra.mxu0 %v149
    %406 = vmatprep.subr.mxu0 %v158
    %407 = vmatpush1.msra.mxu0 %v157
    %408 = vmatprep.subr.mxu0 %v166
    %409 = vmatpush1.msra.mxu0 %v165
    %410 = vmatprep.subr.mxu0 %v174
    %411 = vmatpush1.msra.mxu0 %v173
    %412 = vmatprep.subr.mxu0 %v182
    %413 = vmatpush1.msra.mxu0 %v181
    %414 = vmatprep.subr.mxu0 %v190
    %415 = vmatpush1.msra.mxu0 %v189
    %416 = vmatprep.subr.mxu0 %v198
    %417 = vmatpush1.msra.mxu0 %v197
    %418 = vmatprep.subr.mxu0 %v206
    %419 = vmatpush1.msra.mxu0 %v205
    %420 = vmatprep.subr.mxu0 %v214
    %421 = vmatpush1.msra.mxu0 %v213
    %422 = vmatprep.subr.mxu0 %v222
    %423 = vmatpush1.msra.mxu0 %v221
    %424 = vmatprep.subr.mxu0 %v230
    %425 = vmatpush1.msra.mxu0 %v229
    %426 = vmatprep.subr.mxu0 %v238
    %427 = vmatpush1.msra.mxu0 %v237
    %428 = vmatprep.subr.mxu0 %v246
    %429 = vmatpush1.msra.mxu0 %v245
    %430 = vmatprep.subr.mxu0 %v254
    %431 = vmatpush1.msra.mxu0 %v253
    %432 = vmatprep.subr.mxu0 %v262
    %433 = vmatpush1.msra.mxu0 %v261
    %434 = vmatprep.subr.mxu0 %v270
    %435 = vmatpush1.msra.mxu0 %v269
    %436 = vmatprep.subr.mxu0 %v278
    %437 = vmatpush1.msra.mxu0 %v277
    %438 = vmatprep.subr.mxu0 %v286
    %439 = vmatpush1.msra.mxu0 %v285
    %440 = vmatprep.subr.mxu0 %v294
    %441 = vmatpush1.msra.mxu0 %v293
    %442 = vmatprep.subr.mxu0 %v302
    %443 = vmatpush1.msra.mxu0 %v301
    %444 = vmatprep.subr.mxu0 %v310
    %445 = vmatpush1.msra.mxu0 %v309
    %446 = vmatprep.subr.mxu0 %v318
    %447 = vmatpush1.msra.mxu0 %v317
    %448 = vmatprep.subr.mxu0 %v326
    %449 = vmatpush1.msra.mxu0 %v325
    %450 = vmatprep.mubr.f32.mxu0 %v383
    %451 = vmatmul.mubr.f32.gmra.mrb[0].mxu0 %v382
    %v452 = vpop.f32.mrb[0].mxu0
    %v453 = vadd.f32 %v338, %v452
    %v454 = vpop.f32.mrb[0].mxu0
    %v455 = vadd.f32 %v342, %v454
    %456 = vdwg.mxu0
    %457 = vmatprep.subr.mxu0 %v80
    %458 = vmatpush1.msra.mxu0 %v79
    %459 = vmatprep.subr.mxu0 %v88
    %460 = vmatpush1.msra.mxu0 %v87
    %461 = vmatprep.subr.mxu0 %v96
    %462 = vmatpush1.msra.mxu0 %v95
    %463 = vmatprep.subr.mxu0 %v104
    %464 = vmatpush1.msra.mxu0 %v103
    %465 = vmatprep.subr.mxu0 %v112
    %466 = vmatpush1.msra.mxu0 %v111
    %467 = vmatprep.subr.mxu0 %v120
    %468 = vmatpush1.msra.mxu0 %v119
    %469 = vmatprep.subr.mxu0 %v128
    %470 = vmatpush1.msra.mxu0 %v127
    %471 = vmatprep.subr.mxu0 %v136
    %472 = vmatpush1.msra.mxu0 %v135
    %473 = vmatprep.subr.mxu0 %v144
    %474 = vmatpush1.msra.mxu0 %v143
    %475 = vmatprep.subr.mxu0 %v152
    %476 = vmatpush1.msra.mxu0 %v151
    %477 = vmatprep.subr.mxu0 %v160
    %478 = vmatpush1.msra.mxu0 %v159
    %479 = vmatprep.subr.mxu0 %v168
    %480 = vmatpush1.msra.mxu0 %v167
    %481 = vmatprep.subr.mxu0 %v176
    %482 = vmatpush1.msra.mxu0 %v175
    %483 = vmatprep.subr.mxu0 %v184
    %484 = vmatpush1.msra.mxu0 %v183
    %485 = vmatprep.subr.mxu0 %v192
    %486 = vmatpush1.msra.mxu0 %v191
    %487 = vmatprep.subr.mxu0 %v200
    %488 = vmatpush1.msra.mxu0 %v199
    %489 = vmatprep.subr.mxu0 %v208
    %490 = vmatpush1.msra.mxu0 %v207
    %491 = vmatprep.subr.mxu0 %v216
    %492 = vmatpush1.msra.mxu0 %v215
    %493 = vmatprep.subr.mxu0 %v224
    %494 = vmatpush1.msra.mxu0 %v223
    %495 = vmatprep.subr.mxu0 %v232
    %496 = vmatpush1.msra.mxu0 %v231
    %497 = vmatprep.subr.mxu0 %v240
    %498 = vmatpush1.msra.mxu0 %v239
    %499 = vmatprep.subr.mxu0 %v248
    %500 = vmatpush1.msra.mxu0 %v247
    %501 = vmatprep.subr.mxu0 %v256
    %502 = vmatpush1.msra.mxu0 %v255
    %503 = vmatprep.subr.mxu0 %v264
    %504 = vmatpush1.msra.mxu0 %v263
    %505 = vmatprep.subr.mxu0 %v272
    %506 = vmatpush1.msra.mxu0 %v271
    %507 = vmatprep.subr.mxu0 %v280
    %508 = vmatpush1.msra.mxu0 %v279
    %509 = vmatprep.subr.mxu0 %v288
    %510 = vmatpush1.msra.mxu0 %v287
    %511 = vmatprep.subr.mxu0 %v296
    %512 = vmatpush1.msra.mxu0 %v295
    %513 = vmatprep.subr.mxu0 %v304
    %514 = vmatpush1.msra.mxu0 %v303
    %515 = vmatprep.subr.mxu0 %v312
    %516 = vmatpush1.msra.mxu0 %v311
    %517 = vmatprep.subr.mxu0 %v320
    %518 = vmatpush1.msra.mxu0 %v319
    %519 = vmatprep.subr.mxu0 %v328
    %520 = vmatpush1.msra.mxu0 %v327
    %521 = vmatprep.mubr.f32.mxu0 %v383
    %522 = vmatmul.mubr.f32.gmra.mrb[0].mxu0 %v382
    %v523 = vpop.f32.mrb[0].mxu0
    %v524 = vadd.f32 %v346, %v523
    %v525 = vpop.f32.mrb[0].mxu0
    %v526 = vadd.f32 %v350, %v525
    %527 = vdwg.mxu0
    %528 = vmatprep.subr.mxu0 %v82
    %529 = vmatpush1.msra.mxu0 %v81
    %530 = vmatprep.subr.mxu0 %v90
    %531 = vmatpush1.msra.mxu0 %v89
    %532 = vmatprep.subr.mxu0 %v98
    %533 = vmatpush1.msra.mxu0 %v97
    %534 = vmatprep.subr.mxu0 %v106
    %535 = vmatpush1.msra.mxu0 %v105
    %536 = vmatprep.subr.mxu0 %v114
    %537 = vmatpush1.msra.mxu0 %v113
    %538 = vmatprep.subr.mxu0 %v122
    %539 = vmatpush1.msra.mxu0 %v121
    %540 = vmatprep.subr.mxu0 %v130
    %541 = vmatpush1.msra.mxu0 %v129
    %542 = vmatprep.subr.mxu0 %v138
    %543 = vmatpush1.msra.mxu0 %v137
    %544 = vmatprep.subr.mxu0 %v146
    %545 = vmatpush1.msra.mxu0 %v145
    %546 = vmatprep.subr.mxu0 %v154
    %547 = vmatpush1.msra.mxu0 %v153
    %548 = vmatprep.subr.mxu0 %v162
    %549 = vmatpush1.msra.mxu0 %v161
    %550 = vmatprep.subr.mxu0 %v170
    %551 = vmatpush1.msra.mxu0 %v169
    %552 = vmatprep.subr.mxu0 %v178
    %553 = vmatpush1.msra.mxu0 %v177
    %554 = vmatprep.subr.mxu0 %v186
    %555 = vmatpush1.msra.mxu0 %v185
    %556 = vmatprep.subr.mxu0 %v194
    %557 = vmatpush1.msra.mxu0 %v193
    %558 = vmatprep.subr.mxu0 %v202
    %559 = vmatpush1.msra.mxu0 %v201
    %560 = vmatprep.subr.mxu0 %v210
    %561 = vmatpush1.msra.mxu0 %v209
    %562 = vmatprep.subr.mxu0 %v218
    %563 = vmatpush1.msra.mxu0 %v217
    %564 = vmatprep.subr.mxu0 %v226
    %565 = vmatpush1.msra.mxu0 %v225
    %566 = vmatprep.subr.mxu0 %v234
    %567 = vmatpush1.msra.mxu0 %v233
    %568 = vmatprep.subr.mxu0 %v242
    %569 = vmatpush1.msra.mxu0 %v241
    %570 = vmatprep.subr.mxu0 %v250
    %571 = vmatpush1.msra.mxu0 %v249
    %572 = vmatprep.subr.mxu0 %v258
    %573 = vmatpush1.msra.mxu0 %v257
    %574 = vmatprep.subr.mxu0 %v266
    %575 = vmatpush1.msra.mxu0 %v265
    %576 = vmatprep.subr.mxu0 %v274
    %577 = vmatpush1.msra.mxu0 %v273
    %578 = vmatprep.subr.mxu0 %v282
    %579 = vmatpush1.msra.mxu0 %v281
    %580 = vmatprep.subr.mxu0 %v290
    %581 = vmatpush1.msra.mxu0 %v289
    %582 = vmatprep.subr.mxu0 %v298
    %583 = vmatpush1.msra.mxu0 %v297
    %584 = vmatprep.subr.mxu0 %v306
    %585 = vmatpush1.msra.mxu0 %v305
    %586 = vmatprep.subr.mxu0 %v314
    %587 = vmatpush1.msra.mxu0 %v313
    %588 = vmatprep.subr.mxu0 %v322
    %589 = vmatpush1.msra.mxu0 %v321
    %590 = vmatprep.subr.mxu0 %v330
    %591 = vmatpush1.msra.mxu0 %v329
    %592 = vmatprep.mubr.f32.mxu0 %v383
    %593 = vmatmul.mubr.f32.gmra.mrb[0].mxu0 %v382
    %v594 = vpop.f32.mrb[0].mxu0
    %v595 = vadd.f32 %v354, %v594
    %v596 = vpop.f32.mrb[0].mxu0
    %v597 = vadd.f32 %v358, %v596
    %598 = vdwg.mxu0
    %599 = vmatprep.subr.mxu0 %v84
    %600 = vmatpush1.msra.mxu0 %v83
    %601 = vmatprep.subr.mxu0 %v92
    %602 = vmatpush1.msra.mxu0 %v91
    %603 = vmatprep.subr.mxu0 %v100
    %604 = vmatpush1.msra.mxu0 %v99
    %605 = vmatprep.subr.mxu0 %v108
    %606 = vmatpush1.msra.mxu0 %v107
    %607 = vmatprep.subr.mxu0 %v116
    %608 = vmatpush1.msra.mxu0 %v115
    %609 = vmatprep.subr.mxu0 %v124
    %610 = vmatpush1.msra.mxu0 %v123
    %611 = vmatprep.subr.mxu0 %v132
    %612 = vmatpush1.msra.mxu0 %v131
    %613 = vmatprep.subr.mxu0 %v140
    %614 = vmatpush1.msra.mxu0 %v139
    %615 = vmatprep.subr.mxu0 %v148
    %616 = vmatpush1.msra.mxu0 %v147
    %617 = vmatprep.subr.mxu0 %v156
    %618 = vmatpush1.msra.mxu0 %v155
    %619 = vmatprep.subr.mxu0 %v164
    %620 = vmatpush1.msra.mxu0 %v163
    %621 = vmatprep.subr.mxu0 %v172
    %622 = vmatpush1.msra.mxu0 %v171
    %623 = vmatprep.subr.mxu0 %v180
    %624 = vmatpush1.msra.mxu0 %v179
    %625 = vmatprep.subr.mxu0 %v188
    %626 = vmatpush1.msra.mxu0 %v187
    %627 = vmatprep.subr.mxu0 %v196
    %628 = vmatpush1.msra.mxu0 %v195
    %629 = vmatprep.subr.mxu0 %v204
    %630 = vmatpush1.msra.mxu0 %v203
    %631 = vmatprep.subr.mxu0 %v212
    %632 = vmatpush1.msra.mxu0 %v211
    %633 = vmatprep.subr.mxu0 %v220
    %634 = vmatpush1.msra.mxu0 %v219
    %635 = vmatprep.subr.mxu0 %v228
    %636 = vmatpush1.msra.mxu0 %v227
    %637 = vmatprep.subr.mxu0 %v236
    %638 = vmatpush1.msra.mxu0 %v235
    %639 = vmatprep.subr.mxu0 %v244
    %640 = vmatpush1.msra.mxu0 %v243
    %641 = vmatprep.subr.mxu0 %v252
    %642 = vmatpush1.msra.mxu0 %v251
    %643 = vmatprep.subr.mxu0 %v260
    %644 = vmatpush1.msra.mxu0 %v259
    %645 = vmatprep.subr.mxu0 %v268
    %646 = vmatpush1.msra.mxu0 %v267
    %647 = vmatprep.subr.mxu0 %v276
    %648 = vmatpush1.msra.mxu0 %v275
    %649 = vmatprep.subr.mxu0 %v284
    %650 = vmatpush1.msra.mxu0 %v283
    %651 = vmatprep.subr.mxu0 %v292
    %652 = vmatpush1.msra.mxu0 %v291
    %653 = vmatprep.subr.mxu0 %v300
    %654 = vmatpush1.msra.mxu0 %v299
    %655 = vmatprep.subr.mxu0 %v308
    %656 = vmatpush1.msra.mxu0 %v307
    %657 = vmatprep.subr.mxu0 %v316
    %658 = vmatpush1.msra.mxu0 %v315
    %659 = vmatprep.subr.mxu0 %v324
    %660 = vmatpush1.msra.mxu0 %v323
    %661 = vmatprep.subr.mxu0 %v332
    %662 = vmatpush1.msra.mxu0 %v331
    %663 = vmatprep.mubr.f32.mxu0 %v383
    %664 = vmatmul.mubr.f32.gmra.mrb[0].mxu0 %v382
    %v665 = vpop.f32.mrb[0].mxu0
    %v666 = vadd.f32 %v362, %v665
    %v667 = vpop.f32.mrb[0].mxu0
    %v668 = vadd.f32 %v366, %v667
    %669 = vdwg.mxu0
    %vm670 = vcmp.ge.f32.partialorder %v453, 0.0
    %vm671 = vcmp.ge.f32.partialorder %v455, 0.0
    %vm672 = vcmp.ge.f32.partialorder %v524, 0.0
    %vm673 = vcmp.ge.f32.partialorder %v526, 0.0
    %vm674 = vcmp.ge.f32.partialorder %v595, 0.0
    %vm675 = vcmp.ge.f32.partialorder %v597, 0.0
    %vm676 = vcmp.ge.f32.partialorder %v666, 0.0
    %vm677 = vcmp.ge.f32.partialorder %v668, 0.0
    %v678 = vmul.f32 %v453, 0.01
    %v679 = vmul.f32 %v455, 0.01
    %v680 = vmul.f32 %v524, 0.01
    %v681 = vmul.f32 %v526, 0.01
    %v682 = vmul.f32 %v595, 0.01
    %v683 = vmul.f32 %v597, 0.01
    %v684 = vmul.f32 %v666, 0.01
    %v685 = vmul.f32 %v668, 0.01
    %v686 = vsel %vm670, %v453, %v678
    %v687 = vsel %vm671, %v455, %v679
    %v688 = vsel %vm672, %v524, %v680
    %v689 = vsel %vm673, %v526, %v681
    %v690 = vsel %vm674, %v595, %v682
    %v691 = vsel %vm675, %v597, %v683
    %v692 = vsel %vm676, %v666, %v684
    %v693 = vsel %vm677, %v668, %v685
    %v694 = vld [vmem:[%s4] sm:$0xff]
    %v695 = vld [vmem:[%s4 + $0x8] sm:$0xff]
    %v696 = vld [vmem:[%s4 + $0x10] sm:$0xff]
    %v697 = vld [vmem:[%s4 + $0x18] sm:$0xff]
    %v698 = vld [vmem:[%s4 + $0x20] sm:$0xff]
    %v699 = vld [vmem:[%s4 + $0x28] sm:$0xff]
    %v700 = vld [vmem:[%s4 + $0x30] sm:$0xff]
    %v701 = vld [vmem:[%s4 + $0x38] sm:$0xff]
    %v702 = vld [vmem:[%s4 + $0x40] sm:$0xff]
    %v703 = vld [vmem:[%s4 + $0x48] sm:$0xff]
    %v704 = vld [vmem:[%s4 + $0x50] sm:$0xff]
    %v705 = vld [vmem:[%s4 + $0x58] sm:$0xff]
    %v706 = vld [vmem:[%s4 + $0x60] sm:$0xff]
    %v707 = vld [vmem:[%s4 + $0x68] sm:$0xff]
    %v708 = vld [vmem:[%s4 + $0x70] sm:$0xff]
    %v709 = vld [vmem:[%s4 + $0x78] sm:$0xff]
    %v710 = vld [vmem:[%s4 + $0x80] sm:$0xff]
    %v711 = vld [vmem:[%s4 + $0x88] sm:$0xff]
    %v712 = vld [vmem:[%s4 + $0x90] sm:$0xff]
    %v713 = vld [vmem:[%s4 + $0x98] sm:$0xff]
    %v714 = vld [vmem:[%s4 + $0xa0] sm:$0xff]
    %v715 = vld [vmem:[%s4 + $0xa8] sm:$0xff]
    %v716 = vld [vmem:[%s4 + $0xb0] sm:$0xff]
    %v717 = vld [vmem:[%s4 + $0xb8] sm:$0xff]
    %v718 = vld [vmem:[%s4 + $0xc0] sm:$0xff]
    %v719 = vld [vmem:[%s4 + $0xc8] sm:$0xff]
    %v720 = vld [vmem:[%s4 + $0xd0] sm:$0xff]
    %v721 = vld [vmem:[%s4 + $0xd8] sm:$0xff]
    %v722 = vld [vmem:[%s4 + $0xe0] sm:$0xff]
    %v723 = vld [vmem:[%s4 + $0xe8] sm:$0xff]
    %v724 = vld [vmem:[%s4 + $0xf0] sm:$0xff]
    %v725 = vld [vmem:[%s4 + $0xf8] sm:$0xff]
    %v726 = vld [vmem:[%s4 + $0x100] sm:$0xff]
    %v727 = vld [vmem:[%s4 + $0x108] sm:$0xff]
    %v728 = vld [vmem:[%s4 + $0x110] sm:$0xff]
    %v729 = vld [vmem:[%s4 + $0x118] sm:$0xff]
    %v730 = vld [vmem:[%s4 + $0x120] sm:$0xff]
    %v731 = vld [vmem:[%s4 + $0x128] sm:$0xff]
    %v732 = vld [vmem:[%s4 + $0x130] sm:$0xff]
    %v733 = vld [vmem:[%s4 + $0x138] sm:$0xff]
    %v734 = vld [vmem:[%s4 + $0x140] sm:$0xff]
    %v735 = vld [vmem:[%s4 + $0x148] sm:$0xff]
    %v736 = vld [vmem:[%s4 + $0x150] sm:$0xff]
    %v737 = vld [vmem:[%s4 + $0x158] sm:$0xff]
    %v738 = vld [vmem:[%s4 + $0x160] sm:$0xff]
    %v739 = vld [vmem:[%s4 + $0x168] sm:$0xff]
    %v740 = vld [vmem:[%s4 + $0x170] sm:$0xff]
    %v741 = vld [vmem:[%s4 + $0x178] sm:$0xff]
    %v742 = vld [vmem:[%s4 + $0x180] sm:$0xff]
    %v743 = vld [vmem:[%s4 + $0x188] sm:$0xff]
    %v744 = vld [vmem:[%s4 + $0x190] sm:$0xff]
    %v745 = vld [vmem:[%s4 + $0x198] sm:$0xff]
    %v746 = vld [vmem:[%s4 + $0x1a0] sm:$0xff]
    %v747 = vld [vmem:[%s4 + $0x1a8] sm:$0xff]
    %v748 = vld [vmem:[%s4 + $0x1b0] sm:$0xff]
    %v749 = vld [vmem:[%s4 + $0x1b8] sm:$0xff]
    %v750 = vld [vmem:[%s4 + $0x1c0] sm:$0xff]
    %v751 = vld [vmem:[%s4 + $0x1c8] sm:$0xff]
    %v752 = vld [vmem:[%s4 + $0x1d0] sm:$0xff]
    %v753 = vld [vmem:[%s4 + $0x1d8] sm:$0xff]
    %v754 = vld [vmem:[%s4 + $0x1e0] sm:$0xff]
    %v755 = vld [vmem:[%s4 + $0x1e8] sm:$0xff]
    %v756 = vld [vmem:[%s4 + $0x1f0] sm:$0xff]
    %v757 = vld [vmem:[%s4 + $0x1f8] sm:$0xff]
    %v758 = vld [vmem:[%s4 + $0x200] sm:$0xff]
    %v759 = vld [vmem:[%s4 + $0x208] sm:$0xff]
    %v760 = vld [vmem:[%s4 + $0x210] sm:$0xff]
    %v761 = vld [vmem:[%s4 + $0x218] sm:$0xff]
    %v762 = vld [vmem:[%s4 + $0x220] sm:$0xff]
    %v763 = vld [vmem:[%s4 + $0x228] sm:$0xff]
    %v764 = vld [vmem:[%s4 + $0x230] sm:$0xff]
    %v765 = vld [vmem:[%s4 + $0x238] sm:$0xff]
    %v766 = vld [vmem:[%s4 + $0x240] sm:$0xff]
    %v767 = vld [vmem:[%s4 + $0x248] sm:$0xff]
    %v768 = vld [vmem:[%s4 + $0x250] sm:$0xff]
    %v769 = vld [vmem:[%s4 + $0x258] sm:$0xff]
    %v770 = vld [vmem:[%s4 + $0x260] sm:$0xff]
    %v771 = vld [vmem:[%s4 + $0x268] sm:$0xff]
    %v772 = vld [vmem:[%s4 + $0x270] sm:$0xff]
    %v773 = vld [vmem:[%s4 + $0x278] sm:$0xff]
    %v774 = vld [vmem:[%s4 + $0x280] sm:$0xff]
    %v775 = vld [vmem:[%s4 + $0x288] sm:$0xff]
    %v776 = vld [vmem:[%s4 + $0x290] sm:$0xff]
    %v777 = vld [vmem:[%s4 + $0x298] sm:$0xff]
    %v778 = vld [vmem:[%s4 + $0x2a0] sm:$0xff]
    %v779 = vld [vmem:[%s4 + $0x2a8] sm:$0xff]
    %v780 = vld [vmem:[%s4 + $0x2b0] sm:$0xff]
    %v781 = vld [vmem:[%s4 + $0x2b8] sm:$0xff]
    %v782 = vld [vmem:[%s4 + $0x2c0] sm:$0xff]
    %v783 = vld [vmem:[%s4 + $0x2c8] sm:$0xff]
    %v784 = vld [vmem:[%s4 + $0x2d0] sm:$0xff]
    %v785 = vld [vmem:[%s4 + $0x2d8] sm:$0xff]
    %v786 = vld [vmem:[%s4 + $0x2e0] sm:$0xff]
    %v787 = vld [vmem:[%s4 + $0x2e8] sm:$0xff]
    %v788 = vld [vmem:[%s4 + $0x2f0] sm:$0xff]
    %v789 = vld [vmem:[%s4 + $0x2f8] sm:$0xff]
    %v790 = vld [vmem:[%s4 + $0x300] sm:$0xff]
    %v791 = vld [vmem:[%s4 + $0x308] sm:$0xff]
    %v792 = vld [vmem:[%s4 + $0x310] sm:$0xff]
    %v793 = vld [vmem:[%s4 + $0x318] sm:$0xff]
    %v794 = vld [vmem:[%s4 + $0x320] sm:$0xff]
    %v795 = vld [vmem:[%s4 + $0x328] sm:$0xff]
    %v796 = vld [vmem:[%s4 + $0x330] sm:$0xff]
    %v797 = vld [vmem:[%s4 + $0x338] sm:$0xff]
    %v798 = vld [vmem:[%s4 + $0x340] sm:$0xff]
    %v799 = vld [vmem:[%s4 + $0x348] sm:$0xff]
    %v800 = vld [vmem:[%s4 + $0x350] sm:$0xff]
    %v801 = vld [vmem:[%s4 + $0x358] sm:$0xff]
    %v802 = vld [vmem:[%s4 + $0x360] sm:$0xff]
    %v803 = vld [vmem:[%s4 + $0x368] sm:$0xff]
    %v804 = vld [vmem:[%s4 + $0x370] sm:$0xff]
    %v805 = vld [vmem:[%s4 + $0x378] sm:$0xff]
    %v806 = vld [vmem:[%s4 + $0x380] sm:$0xff]
    %v807 = vld [vmem:[%s4 + $0x388] sm:$0xff]
    %v808 = vld [vmem:[%s4 + $0x390] sm:$0xff]
    %v809 = vld [vmem:[%s4 + $0x398] sm:$0xff]
    %v810 = vld [vmem:[%s4 + $0x3a0] sm:$0xff]
    %v811 = vld [vmem:[%s4 + $0x3a8] sm:$0xff]
    %v812 = vld [vmem:[%s4 + $0x3b0] sm:$0xff]
    %v813 = vld [vmem:[%s4 + $0x3b8] sm:$0xff]
    %v814 = vld [vmem:[%s4 + $0x3c0] sm:$0xff]
    %v815 = vld [vmem:[%s4 + $0x3c8] sm:$0xff]
    %v816 = vld [vmem:[%s4 + $0x3d0] sm:$0xff]
    %v817 = vld [vmem:[%s4 + $0x3d8] sm:$0xff]
    %v818 = vld [vmem:[%s4 + $0x3e0] sm:$0xff]
    %v819 = vld [vmem:[%s4 + $0x3e8] sm:$0xff]
    %v820 = vld [vmem:[%s4 + $0x3f0] sm:$0xff]
    %v821 = vld [vmem:[%s4 + $0x3f8] sm:$0xff]
    %v822 = vld [vmem:[%s5] sm:$0x1]
    %v824 = vlaneseq
    %v825 = vshrl.u32 %v824, 7
    %v826 = vsub.s32 0, %v825
    %v827 = vrot.slane %v822, %v826
    %829 = vmatprep.subr.mxu0 0.0
    %830 = vmatpush1.msra.mxu0 %v694
    %831 = vmatprep.subr.mxu0 0.0
    %832 = vmatpush1.msra.mxu0 %v695
    %833 = vmatprep.subr.mxu0 0.0
    %834 = vmatpush1.msra.mxu0 %v696
    %835 = vmatprep.subr.mxu0 0.0
    %836 = vmatpush1.msra.mxu0 %v697
    %837 = vmatprep.subr.mxu0 0.0
    %838 = vmatpush1.msra.mxu0 %v698
    %839 = vmatprep.subr.mxu0 0.0
    %840 = vmatpush1.msra.mxu0 %v699
    %841 = vmatprep.subr.mxu0 0.0
    %842 = vmatpush1.msra.mxu0 %v700
    %843 = vmatprep.subr.mxu0 0.0
    %844 = vmatpush1.msra.mxu0 %v701
    %845 = vmatprep.subr.mxu0 0.0
    %846 = vmatpush1.msra.mxu0 %v702
    %847 = vmatprep.subr.mxu0 0.0
    %848 = vmatpush1.msra.mxu0 %v703
    %849 = vmatprep.subr.mxu0 0.0
    %850 = vmatpush1.msra.mxu0 %v704
    %851 = vmatprep.subr.mxu0 0.0
    %852 = vmatpush1.msra.mxu0 %v705
    %853 = vmatprep.subr.mxu0 0.0
    %854 = vmatpush1.msra.mxu0 %v706
    %855 = vmatprep.subr.mxu0 0.0
    %856 = vmatpush1.msra.mxu0 %v707
    %857 = vmatprep.subr.mxu0 0.0
    %858 = vmatpush1.msra.mxu0 %v708
    %859 = vmatprep.subr.mxu0 0.0
    %860 = vmatpush1.msra.mxu0 %v709
    %861 = vmatprep.subr.mxu0 0.0
    %862 = vmatpush1.msra.mxu0 %v710
    %863 = vmatprep.subr.mxu0 0.0
    %864 = vmatpush1.msra.mxu0 %v711
    %865 = vmatprep.subr.mxu0 0.0
    %866 = vmatpush1.msra.mxu0 %v712
    %867 = vmatprep.subr.mxu0 0.0
    %868 = vmatpush1.msra.mxu0 %v713
    %869 = vmatprep.subr.mxu0 0.0
    %870 = vmatpush1.msra.mxu0 %v714
    %871 = vmatprep.subr.mxu0 0.0
    %872 = vmatpush1.msra.mxu0 %v715
    %873 = vmatprep.subr.mxu0 0.0
    %874 = vmatpush1.msra.mxu0 %v716
    %875 = vmatprep.subr.mxu0 0.0
    %876 = vmatpush1.msra.mxu0 %v717
    %877 = vmatprep.subr.mxu0 0.0
    %878 = vmatpush1.msra.mxu0 %v718
    %879 = vmatprep.subr.mxu0 0.0
    %880 = vmatpush1.msra.mxu0 %v719
    %881 = vmatprep.subr.mxu0 0.0
    %882 = vmatpush1.msra.mxu0 %v720
    %883 = vmatprep.subr.mxu0 0.0
    %884 = vmatpush1.msra.mxu0 %v721
    %885 = vmatprep.subr.mxu0 0.0
    %886 = vmatpush1.msra.mxu0 %v722
    %887 = vmatprep.subr.mxu0 0.0
    %888 = vmatpush1.msra.mxu0 %v723
    %889 = vmatprep.subr.mxu0 0.0
    %890 = vmatpush1.msra.mxu0 %v724
    %891 = vmatprep.subr.mxu0 0.0
    %892 = vmatpush1.msra.mxu0 %v725
    %893 = vmatprep.mubr.f32.mxu0 %v687
    %894 = vmatmul.mubr.f32.gmra.mrb[0].mxu0 %v686
    %v895 = vpop.f32.mrb[0].mxu0
    %v896 = vadd.f32 %v827, %v895
    %v897 = vpop.f32.mrb[0].mxu0
    %898 = vdwg.mxu0
    %899 = vmatprep.subr.mxu0 0.0
    %900 = vmatpush1.msra.mxu0 %v726
    %901 = vmatprep.subr.mxu0 0.0
    %902 = vmatpush1.msra.mxu0 %v727
    %903 = vmatprep.subr.mxu0 0.0
    %904 = vmatpush1.msra.mxu0 %v728
    %905 = vmatprep.subr.mxu0 0.0
    %906 = vmatpush1.msra.mxu0 %v729
    %907 = vmatprep.subr.mxu0 0.0
    %908 = vmatpush1.msra.mxu0 %v730
    %909 = vmatprep.subr.mxu0 0.0
    %910 = vmatpush1.msra.mxu0 %v731
    %911 = vmatprep.subr.mxu0 0.0
    %912 = vmatpush1.msra.mxu0 %v732
    %913 = vmatprep.subr.mxu0 0.0
    %914 = vmatpush1.msra.mxu0 %v733
    %915 = vmatprep.subr.mxu0 0.0
    %916 = vmatpush1.msra.mxu0 %v734
    %917 = vmatprep.subr.mxu0 0.0
    %918 = vmatpush1.msra.mxu0 %v735
    %919 = vmatprep.subr.mxu0 0.0
    %920 = vmatpush1.msra.mxu0 %v736
    %921 = vmatprep.subr.mxu0 0.0
    %922 = vmatpush1.msra.mxu0 %v737
    %923 = vmatprep.subr.mxu0 0.0
    %924 = vmatpush1.msra.mxu0 %v738
    %925 = vmatprep.subr.mxu0 0.0
    %926 = vmatpush1.msra.mxu0 %v739
    %927 = vmatprep.subr.mxu0 0.0
    %928 = vmatpush1.msra.mxu0 %v740
    %929 = vmatprep.subr.mxu0 0.0
    %930 = vmatpush1.msra.mxu0 %v741
    %931 = vmatprep.subr.mxu0 0.0
    %932 = vmatpush1.msra.mxu0 %v742
    %933 = vmatprep.subr.mxu0 0.0
    %934 = vmatpush1.msra.mxu0 %v743
    %935 = vmatprep.subr.mxu0 0.0
    %936 = vmatpush1.msra.mxu0 %v744
    %937 = vmatprep.subr.mxu0 0.0
    %938 = vmatpush1.msra.mxu0 %v745
    %939 = vmatprep.subr.mxu0 0.0
    %940 = vmatpush1.msra.mxu0 %v746
    %941 = vmatprep.subr.mxu0 0.0
    %942 = vmatpush1.msra.mxu0 %v747
    %943 = vmatprep.subr.mxu0 0.0
    %944 = vmatpush1.msra.mxu0 %v748
    %945 = vmatprep.subr.mxu0 0.0
    %946 = vmatpush1.msra.mxu0 %v749
    %947 = vmatprep.subr.mxu0 0.0
    %948 = vmatpush1.msra.mxu0 %v750
    %949 = vmatprep.subr.mxu0 0.0
    %950 = vmatpush1.msra.mxu0 %v751
    %951 = vmatprep.subr.mxu0 0.0
    %952 = vmatpush1.msra.mxu0 %v752
    %953 = vmatprep.subr.mxu0 0.0
    %954 = vmatpush1.msra.mxu0 %v753
    %955 = vmatprep.subr.mxu0 0.0
    %956 = vmatpush1.msra.mxu0 %v754
    %957 = vmatprep.subr.mxu0 0.0
    %958 = vmatpush1.msra.mxu0 %v755
    %959 = vmatprep.subr.mxu0 0.0
    %960 = vmatpush1.msra.mxu0 %v756
    %961 = vmatprep.subr.mxu0 0.0
    %962 = vmatpush1.msra.mxu0 %v757
    %963 = vmatprep.mubr.f32.mxu0 %v689
    %964 = vmatmul.mubr.f32.gmra.mrb[0].mxu0 %v688
    %v965 = vpop.f32.mrb[0].mxu0
    %v966 = vadd.f32 %v896, %v965
    %v967 = vpop.f32.mrb[0].mxu0
    %968 = vdwg.mxu0
    %969 = vmatprep.subr.mxu0 0.0
    %970 = vmatpush1.msra.mxu0 %v758
    %971 = vmatprep.subr.mxu0 0.0
    %972 = vmatpush1.msra.mxu0 %v759
    %973 = vmatprep.subr.mxu0 0.0
    %974 = vmatpush1.msra.mxu0 %v760
    %975 = vmatprep.subr.mxu0 0.0
    %976 = vmatpush1.msra.mxu0 %v761
    %977 = vmatprep.subr.mxu0 0.0
    %978 = vmatpush1.msra.mxu0 %v762
    %979 = vmatprep.subr.mxu0 0.0
    %980 = vmatpush1.msra.mxu0 %v763
    %981 = vmatprep.subr.mxu0 0.0
    %982 = vmatpush1.msra.mxu0 %v764
    %983 = vmatprep.subr.mxu0 0.0
    %984 = vmatpush1.msra.mxu0 %v765
    %985 = vmatprep.subr.mxu0 0.0
    %986 = vmatpush1.msra.mxu0 %v766
    %987 = vmatprep.subr.mxu0 0.0
    %988 = vmatpush1.msra.mxu0 %v767
    %989 = vmatprep.subr.mxu0 0.0
    %990 = vmatpush1.msra.mxu0 %v768
    %991 = vmatprep.subr.mxu0 0.0
    %992 = vmatpush1.msra.mxu0 %v769
    %993 = vmatprep.subr.mxu0 0.0
    %994 = vmatpush1.msra.mxu0 %v770
    %995 = vmatprep.subr.mxu0 0.0
    %996 = vmatpush1.msra.mxu0 %v771
    %997 = vmatprep.subr.mxu0 0.0
    %998 = vmatpush1.msra.mxu0 %v772
    %999 = vmatprep.subr.mxu0 0.0
    %1000 = vmatpush1.msra.mxu0 %v773
    %1001 = vmatprep.subr.mxu0 0.0
    %1002 = vmatpush1.msra.mxu0 %v774
    %1003 = vmatprep.subr.mxu0 0.0
    %1004 = vmatpush1.msra.mxu0 %v775
    %1005 = vmatprep.subr.mxu0 0.0
    %1006 = vmatpush1.msra.mxu0 %v776
    %1007 = vmatprep.subr.mxu0 0.0
    %1008 = vmatpush1.msra.mxu0 %v777
    %1009 = vmatprep.subr.mxu0 0.0
    %1010 = vmatpush1.msra.mxu0 %v778
    %1011 = vmatprep.subr.mxu0 0.0
    %1012 = vmatpush1.msra.mxu0 %v779
    %1013 = vmatprep.subr.mxu0 0.0
    %1014 = vmatpush1.msra.mxu0 %v780
    %1015 = vmatprep.subr.mxu0 0.0
    %1016 = vmatpush1.msra.mxu0 %v781
    %1017 = vmatprep.subr.mxu0 0.0
    %1018 = vmatpush1.msra.mxu0 %v782
    %1019 = vmatprep.subr.mxu0 0.0
    %1020 = vmatpush1.msra.mxu0 %v783
    %1021 = vmatprep.subr.mxu0 0.0
    %1022 = vmatpush1.msra.mxu0 %v784
    %1023 = vmatprep.subr.mxu0 0.0
    %1024 = vmatpush1.msra.mxu0 %v785
    %1025 = vmatprep.subr.mxu0 0.0
    %1026 = vmatpush1.msra.mxu0 %v786
    %1027 = vmatprep.subr.mxu0 0.0
    %1028 = vmatpush1.msra.mxu0 %v787
    %1029 = vmatprep.subr.mxu0 0.0
    %1030 = vmatpush1.msra.mxu0 %v788
    %1031 = vmatprep.subr.mxu0 0.0
    %1032 = vmatpush1.msra.mxu0 %v789
    %1033 = vmatprep.mubr.f32.mxu0 %v691
    %1034 = vmatmul.mubr.f32.gmra.mrb[0].mxu0 %v690
    %v1035 = vpop.f32.mrb[0].mxu0
    %v1036 = vadd.f32 %v966, %v1035
    %v1037 = vpop.f32.mrb[0].mxu0
    %1038 = vdwg.mxu0
    %1039 = vmatprep.subr.mxu0 0.0
    %1040 = vmatpush1.msra.mxu0 %v790
    %1041 = vmatprep.subr.mxu0 0.0
    %1042 = vmatpush1.msra.mxu0 %v791
    %1043 = vmatprep.subr.mxu0 0.0
    %1044 = vmatpush1.msra.mxu0 %v792
    %1045 = vmatprep.subr.mxu0 0.0
    %1046 = vmatpush1.msra.mxu0 %v793
    %1047 = vmatprep.subr.mxu0 0.0
    %1048 = vmatpush1.msra.mxu0 %v794
    %1049 = vmatprep.subr.mxu0 0.0
    %1050 = vmatpush1.msra.mxu0 %v795
    %1051 = vmatprep.subr.mxu0 0.0
    %1052 = vmatpush1.msra.mxu0 %v796
    %1053 = vmatprep.subr.mxu0 0.0
    %1054 = vmatpush1.msra.mxu0 %v797
    %1055 = vmatprep.subr.mxu0 0.0
    %1056 = vmatpush1.msra.mxu0 %v798
    %1057 = vmatprep.subr.mxu0 0.0
    %1058 = vmatpush1.msra.mxu0 %v799
    %1059 = vmatprep.subr.mxu0 0.0
    %1060 = vmatpush1.msra.mxu0 %v800
    %1061 = vmatprep.subr.mxu0 0.0
    %1062 = vmatpush1.msra.mxu0 %v801
    %1063 = vmatprep.subr.mxu0 0.0
    %1064 = vmatpush1.msra.mxu0 %v802
    %1065 = vmatprep.subr.mxu0 0.0
    %1066 = vmatpush1.msra.mxu0 %v803
    %1067 = vmatprep.subr.mxu0 0.0
    %1068 = vmatpush1.msra.mxu0 %v804
    %1069 = vmatprep.subr.mxu0 0.0
    %1070 = vmatpush1.msra.mxu0 %v805
    %1071 = vmatprep.subr.mxu0 0.0
    %1072 = vmatpush1.msra.mxu0 %v806
    %1073 = vmatprep.subr.mxu0 0.0
    %1074 = vmatpush1.msra.mxu0 %v807
    %1075 = vmatprep.subr.mxu0 0.0
    %1076 = vmatpush1.msra.mxu0 %v808
    %1077 = vmatprep.subr.mxu0 0.0
    %1078 = vmatpush1.msra.mxu0 %v809
    %1079 = vmatprep.subr.mxu0 0.0
    %1080 = vmatpush1.msra.mxu0 %v810
    %1081 = vmatprep.subr.mxu0 0.0
    %1082 = vmatpush1.msra.mxu0 %v811
    %1083 = vmatprep.subr.mxu0 0.0
    %1084 = vmatpush1.msra.mxu0 %v812
    %1085 = vmatprep.subr.mxu0 0.0
    %1086 = vmatpush1.msra.mxu0 %v813
    %1087 = vmatprep.subr.mxu0 0.0
    %1088 = vmatpush1.msra.mxu0 %v814
    %1089 = vmatprep.subr.mxu0 0.0
    %1090 = vmatpush1.msra.mxu0 %v815
    %1091 = vmatprep.subr.mxu0 0.0
    %1092 = vmatpush1.msra.mxu0 %v816
    %1093 = vmatprep.subr.mxu0 0.0
    %1094 = vmatpush1.msra.mxu0 %v817
    %1095 = vmatprep.subr.mxu0 0.0
    %1096 = vmatpush1.msra.mxu0 %v818
    %1097 = vmatprep.subr.mxu0 0.0
    %1098 = vmatpush1.msra.mxu0 %v819
    %1099 = vmatprep.subr.mxu0 0.0
    %1100 = vmatpush1.msra.mxu0 %v820
    %1101 = vmatprep.subr.mxu0 0.0
    %1102 = vmatpush1.msra.mxu0 %v821
    %1103 = vmatprep.mubr.f32.mxu0 %v693
    %1104 = vmatmul.mubr.f32.gmra.mrb[0].mxu0 %v692
    %v1105 = vpop.f32.mrb[0].mxu0
    %v1106 = vadd.f32 %v1036, %v1105
    %v1107 = vpop.f32.mrb[0].mxu0
    %1108 = vdwg.mxu0
    %v1109 = vmul.f32 %v1106, 0.5
    %v1110 = vmul.f32 %v1109, 1.442695
    %v1111 = vpow.pop %v1110
    %v1112 = vld [vmem:[%s1] sm:$0x1]
    %v1114 = vlaneseq
    %v1115 = vshrl.u32 %v1114, 7
    %v1116 = vsub.s32 0, %v1115
    %v1117 = vrot.slane %v1112, %v1116
    %1118 = vrot.lane.b32.xlu0 %v1117, 8
    %v1119 = vpop.permute.xlu0 %1118
    %v1121 = vmul.f32 %v1111, %v1119
    %1123 = vrot.lane.b32.xlu0 %v1121, 120
    %v1124 = vpop.permute.xlu0 %1123
    %v1126 = vadd.f32 %v1106, %v1124
    %vm1127 = vcmask 58368
    %1128 = vst.msk [vmem:[#allocation7] sm:$0x3] %vm1127, %v1126
    %v1129 = vsub.f32 %v1126, %v1106
    %v1130 = vmul.f32 %v1129, %v1129
    %v1131 = vsub.f32 0.0, %v1106
    %v1132 = vmul.f32 %v1131, 1.442695
    %v1133 = vpow.pop %v1132
    %1135 = vrot.lane.b32.xlu0 %v1133, 120
    %v1136 = vpop.permute.xlu0 %1135
    %v1138 = vmul.f32 %v1130, %v1136
    %1140 = vrot.lane.b32.xlu0 %v1106, 120
    %v1141 = vpop.permute.xlu0 %1140
    %v1143 = vadd.f32 %v1138, %v1141
    %v1144 = vmul.f32 %v1143, -0.5
    %v1145 = vmul.f32 %v1126, %v1126
    %v1146 = vmul.f32 %v1145, -0.5
    %v1147 = vsub.f32 %v1146, %v1144
    %v1148 = vsel %vm1127, %v1147, 0.0
    %1149 = vadd.xlane.f32.xlu0 %v1148
    %v1150 = vpop.xlane.xlu0 %1149
    %v1151 = vsub.f32 0.0, %v1150
    %vm1152 = vcmask 1041408
    %v1153 = vsel %vm1152, %v1151, 0.0
    %v1154 = vrot.slane %v1153, 4
    %v1155 = vadd.f32 %v1153, %v1154
    %v1156 = vrot.slane %v1155, 2
    %v1157 = vadd.f32 %v1155, %v1156
    %v1158 = vrot.slane %v1157, 1
    %v1159 = vadd.f32 %v1157, %v1158
    %v1160 = vmul.f32 %v1159, 0.5
    %v1161 = vld [vmem:[%s6] sm:$0xff]
    %v1162 = vld [vmem:[%s6 + $0x8] sm:$0xff]
    %v1163 = vld [vmem:[%s6 + $0x10] sm:$0xff]
    %v1164 = vld [vmem:[%s6 + $0x18] sm:$0xff]
    %v1165 = vld [vmem:[%s6 + $0x20] sm:$0xff]
    %v1166 = vld [vmem:[%s6 + $0x28] sm:$0xff]
    %v1167 = vld [vmem:[%s6 + $0x30] sm:$0xff]
    %v1168 = vld [vmem:[%s6 + $0x38] sm:$0xff]
    %v1169 = vld [vmem:[%s7] sm:$0xff]
    %v1171 = vlaneseq
    %v1172 = vshrl.u32 %v1171, 7
    %v1173 = vsub.s32 0, %v1172
    %v1174 = vrot.slane %v1169, %v1173
    %v1175 = vlaneseq
    %v1176 = vshrl.u32 %v1175, 7
    %v1177 = vsub.s32 1, %v1176
    %v1178 = vrot.slane %v1169, %v1177
    %v1179 = vlaneseq
    %v1180 = vshrl.u32 %v1179, 7
    %v1181 = vsub.s32 2, %v1180
    %v1182 = vrot.slane %v1169, %v1181
    %v1183 = vlaneseq
    %v1184 = vshrl.u32 %v1183, 7
    %v1185 = vsub.s32 3, %v1184
    %v1186 = vrot.slane %v1169, %v1185
    %v1187 = vlaneseq
    %v1188 = vshrl.u32 %v1187, 7
    %v1189 = vsub.s32 4, %v1188
    %v1190 = vrot.slane %v1169, %v1189
    %v1191 = vlaneseq
    %v1192 = vshrl.u32 %v1191, 7
    %v1193 = vsub.s32 5, %v1192
    %v1194 = vrot.slane %v1169, %v1193
    %v1195 = vlaneseq
    %v1196 = vshrl.u32 %v1195, 7
    %v1197 = vsub.s32 6, %v1196
    %v1198 = vrot.slane %v1169, %v1197
    %v1199 = vlaneseq
    %v1200 = vshrl.u32 %v1199, 7
    %v1201 = vsub.s32 7, %v1200
    %v1202 = vrot.slane %v1169, %v1201
    %vm1211 = vcmask 64512
    %v1213 = vsel %vm1211, %v1126, 0
    %1215 = vmatprep.subr.mxu0 %v1162
    %1216 = vmatpush1.msra.mxu0 %v1161
    %1217 = vmatprep.subr.mxu0 0.0
    %1218 = vmatpush1.msra.mxu0 0.0
    %1219 = vmatprep.subr.mxu0 0.0
    %1220 = vmatpush1.msra.mxu0 0.0
    %1221 = vmatprep.subr.mxu0 0.0
    %1222 = vmatpush1.msra.mxu0 0.0
    %1223 = vmatprep.subr.mxu0 0.0
    %1224 = vmatpush1.msra.mxu0 0.0
    %1225 = vmatprep.subr.mxu0 0.0
    %1226 = vmatpush1.msra.mxu0 0.0
    %1227 = vmatprep.subr.mxu0 0.0
    %1228 = vmatpush1.msra.mxu0 0.0
    %1229 = vmatprep.subr.mxu0 0.0
    %1230 = vmatpush1.msra.mxu0 0.0
    %1231 = vmatprep.subr.mxu0 0.0
    %1232 = vmatpush1.msra.mxu0 0.0
    %1233 = vmatprep.subr.mxu0 0.0
    %1234 = vmatpush1.msra.mxu0 0.0
    %1235 = vmatprep.subr.mxu0 0.0
    %1236 = vmatpush1.msra.mxu0 0.0
    %1237 = vmatprep.subr.mxu0 0.0
    %1238 = vmatpush1.msra.mxu0 0.0
    %1239 = vmatprep.subr.mxu0 0.0
    %1240 = vmatpush1.msra.mxu0 0.0
    %1241 = vmatprep.subr.mxu0 0.0
    %1242 = vmatpush1.msra.mxu0 0.0
    %1243 = vmatprep.subr.mxu0 0.0
    %1244 = vmatpush1.msra.mxu0 0.0
    %1245 = vmatprep.subr.mxu0 0.0
    %1246 = vmatpush1.msra.mxu0 0.0
    %1247 = vmatprep.subr.mxu0 0.0
    %1248 = vmatpush1.msra.mxu0 0.0
    %1249 = vmatprep.subr.mxu0 0.0
    %1250 = vmatpush1.msra.mxu0 0.0
    %1251 = vmatprep.subr.mxu0 0.0
    %1252 = vmatpush1.msra.mxu0 0.0
    %1253 = vmatprep.subr.mxu0 0.0
    %1254 = vmatpush1.msra.mxu0 0.0
    %1255 = vmatprep.subr.mxu0 0.0
    %1256 = vmatpush1.msra.mxu0 0.0
    %1257 = vmatprep.subr.mxu0 0.0
    %1258 = vmatpush1.msra.mxu0 0.0
    %1259 = vmatprep.subr.mxu0 0.0
    %1260 = vmatpush1.msra.mxu0 0.0
    %1261 = vmatprep.subr.mxu0 0.0
    %1262 = vmatpush1.msra.mxu0 0.0
    %1263 = vmatprep.subr.mxu0 0.0
    %1264 = vmatpush1.msra.mxu0 0.0
    %1265 = vmatprep.subr.mxu0 0.0
    %1266 = vmatpush1.msra.mxu0 0.0
    %1267 = vmatprep.subr.mxu0 0.0
    %1268 = vmatpush1.msra.mxu0 0.0
    %1269 = vmatprep.subr.mxu0 0.0
    %1270 = vmatpush1.msra.mxu0 0.0
    %1271 = vmatprep.subr.mxu0 0.0
    %1272 = vmatpush1.msra.mxu0 0.0
    %1273 = vmatprep.subr.mxu0 0.0
    %1274 = vmatpush1.msra.mxu0 0.0
    %1275 = vmatprep.subr.mxu0 0.0
    %1276 = vmatpush1.msra.mxu0 0.0
    %1277 = vmatprep.subr.mxu0 0.0
    %1278 = vmatpush1.msra.mxu0 0.0
    %1279 = vmatprep.mubr.f32.mxu0 0.0
    %1280 = vmatmul.mubr.f32.gmra.mrb[0].mxu0 %v1213
    %v1281 = vpop.f32.mrb[0].mxu0
    %v1282 = vadd.f32 %v1174, %v1281
    %v1283 = vpop.f32.mrb[0].mxu0
    %v1284 = vadd.f32 %v1178, %v1283
    %1285 = vdwg.mxu0
    %1286 = vmatprep.subr.mxu0 %v1164
    %1287 = vmatpush1.msra.mxu0 %v1163
    %1288 = vmatprep.subr.mxu0 0.0
    %1289 = vmatpush1.msra.mxu0 0.0
    %1290 = vmatprep.subr.mxu0 0.0
    %1291 = vmatpush1.msra.mxu0 0.0
    %1292 = vmatprep.subr.mxu0 0.0
    %1293 = vmatpush1.msra.mxu0 0.0
    %1294 = vmatprep.subr.mxu0 0.0
    %1295 = vmatpush1.msra.mxu0 0.0
    %1296 = vmatprep.subr.mxu0 0.0
    %1297 = vmatpush1.msra.mxu0 0.0
    %1298 = vmatprep.subr.mxu0 0.0
    %1299 = vmatpush1.msra.mxu0 0.0
    %1300 = vmatprep.subr.mxu0 0.0
    %1301 = vmatpush1.msra.mxu0 0.0
    %1302 = vmatprep.subr.mxu0 0.0
    %1303 = vmatpush1.msra.mxu0 0.0
    %1304 = vmatprep.subr.mxu0 0.0
    %1305 = vmatpush1.msra.mxu0 0.0
    %1306 = vmatprep.subr.mxu0 0.0
    %1307 = vmatpush1.msra.mxu0 0.0
    %1308 = vmatprep.subr.mxu0 0.0
    %1309 = vmatpush1.msra.mxu0 0.0
    %1310 = vmatprep.subr.mxu0 0.0
    %1311 = vmatpush1.msra.mxu0 0.0
    %1312 = vmatprep.subr.mxu0 0.0
    %1313 = vmatpush1.msra.mxu0 0.0
    %1314 = vmatprep.subr.mxu0 0.0
    %1315 = vmatpush1.msra.mxu0 0.0
    %1316 = vmatprep.subr.mxu0 0.0
    %1317 = vmatpush1.msra.mxu0 0.0
    %1318 = vmatprep.subr.mxu0 0.0
    %1319 = vmatpush1.msra.mxu0 0.0
    %1320 = vmatprep.subr.mxu0 0.0
    %1321 = vmatpush1.msra.mxu0 0.0
    %1322 = vmatprep.subr.mxu0 0.0
    %1323 = vmatpush1.msra.mxu0 0.0
    %1324 = vmatprep.subr.mxu0 0.0
    %1325 = vmatpush1.msra.mxu0 0.0
    %1326 = vmatprep.subr.mxu0 0.0
    %1327 = vmatpush1.msra.mxu0 0.0
    %1328 = vmatprep.subr.mxu0 0.0
    %1329 = vmatpush1.msra.mxu0 0.0
    %1330 = vmatprep.subr.mxu0 0.0
    %1331 = vmatpush1.msra.mxu0 0.0
    %1332 = vmatprep.subr.mxu0 0.0
    %1333 = vmatpush1.msra.mxu0 0.0
    %1334 = vmatprep.subr.mxu0 0.0
    %1335 = vmatpush1.msra.mxu0 0.0
    %1336 = vmatprep.subr.mxu0 0.0
    %1337 = vmatpush1.msra.mxu0 0.0
    %1338 = vmatprep.subr.mxu0 0.0
    %1339 = vmatpush1.msra.mxu0 0.0
    %1340 = vmatprep.subr.mxu0 0.0
    %1341 = vmatpush1.msra.mxu0 0.0
    %1342 = vmatprep.subr.mxu0 0.0
    %1343 = vmatpush1.msra.mxu0 0.0
    %1344 = vmatprep.subr.mxu0 0.0
    %1345 = vmatpush1.msra.mxu0 0.0
    %1346 = vmatprep.subr.mxu0 0.0
    %1347 = vmatpush1.msra.mxu0 0.0
    %1348 = vmatprep.subr.mxu0 0.0
    %1349 = vmatpush1.msra.mxu0 0.0
    %1350 = vmatprep.mubr.f32.mxu0 0.0
    %1351 = vmatmul.mubr.f32.gmra.mrb[0].mxu0 %v1213
    %v1352 = vpop.f32.mrb[0].mxu0
    %v1353 = vadd.f32 %v1182, %v1352
    %v1354 = vpop.f32.mrb[0].mxu0
    %v1355 = vadd.f32 %v1186, %v1354
    %1356 = vdwg.mxu0
    %1357 = vmatprep.subr.mxu0 %v1166
    %1358 = vmatpush1.msra.mxu0 %v1165
    %1359 = vmatprep.subr.mxu0 0.0
    %1360 = vmatpush1.msra.mxu0 0.0
    %1361 = vmatprep.subr.mxu0 0.0
    %1362 = vmatpush1.msra.mxu0 0.0
    %1363 = vmatprep.subr.mxu0 0.0
    %1364 = vmatpush1.msra.mxu0 0.0
    %1365 = vmatprep.subr.mxu0 0.0
    %1366 = vmatpush1.msra.mxu0 0.0
    %1367 = vmatprep.subr.mxu0 0.0
    %1368 = vmatpush1.msra.mxu0 0.0
    %1369 = vmatprep.subr.mxu0 0.0
    %1370 = vmatpush1.msra.mxu0 0.0
    %1371 = vmatprep.subr.mxu0 0.0
    %1372 = vmatpush1.msra.mxu0 0.0
    %1373 = vmatprep.subr.mxu0 0.0
    %1374 = vmatpush1.msra.mxu0 0.0
    %1375 = vmatprep.subr.mxu0 0.0
    %1376 = vmatpush1.msra.mxu0 0.0
    %1377 = vmatprep.subr.mxu0 0.0
    %1378 = vmatpush1.msra.mxu0 0.0
    %1379 = vmatprep.subr.mxu0 0.0
    %1380 = vmatpush1.msra.mxu0 0.0
    %1381 = vmatprep.subr.mxu0 0.0
    %1382 = vmatpush1.msra.mxu0 0.0
    %1383 = vmatprep.subr.mxu0 0.0
    %1384 = vmatpush1.msra.mxu0 0.0
    %1385 = vmatprep.subr.mxu0 0.0
    %1386 = vmatpush1.msra.mxu0 0.0
    %1387 = vmatprep.subr.mxu0 0.0
    %1388 = vmatpush1.msra.mxu0 0.0
    %1389 = vmatprep.subr.mxu0 0.0
    %1390 = vmatpush1.msra.mxu0 0.0
    %1391 = vmatprep.subr.mxu0 0.0
    %1392 = vmatpush1.msra.mxu0 0.0
    %1393 = vmatprep.subr.mxu0 0.0
    %1394 = vmatpush1.msra.mxu0 0.0
    %1395 = vmatprep.subr.mxu0 0.0
    %1396 = vmatpush1.msra.mxu0 0.0
    %1397 = vmatprep.subr.mxu0 0.0
    %1398 = vmatpush1.msra.mxu0 0.0
    %1399 = vmatprep.subr.mxu0 0.0
    %1400 = vmatpush1.msra.mxu0 0.0
    %1401 = vmatprep.subr.mxu0 0.0
    %1402 = vmatpush1.msra.mxu0 0.0
    %1403 = vmatprep.subr.mxu0 0.0
    %1404 = vmatpush1.msra.mxu0 0.0
    %1405 = vmatprep.subr.mxu0 0.0
    %1406 = vmatpush1.msra.mxu0 0.0
    %1407 = vmatprep.subr.mxu0 0.0
    %1408 = vmatpush1.msra.mxu0 0.0
    %1409 = vmatprep.subr.mxu0 0.0
    %1410 = vmatpush1.msra.mxu0 0.0
    %1411 = vmatprep.subr.mxu0 0.0
    %1412 = vmatpush1.msra.mxu0 0.0
    %1413 = vmatprep.subr.mxu0 0.0
    %1414 = vmatpush1.msra.mxu0 0.0
    %1415 = vmatprep.subr.mxu0 0.0
    %1416 = vmatpush1.msra.mxu0 0.0
    %1417 = vmatprep.subr.mxu0 0.0
    %1418 = vmatpush1.msra.mxu0 0.0
    %1419 = vmatprep.subr.mxu0 0.0
    %1420 = vmatpush1.msra.mxu0 0.0
    %1421 = vmatprep.mubr.f32.mxu0 0.0
    %1422 = vmatmul.mubr.f32.gmra.mrb[0].mxu0 %v1213
    %v1423 = vpop.f32.mrb[0].mxu0
    %v1424 = vadd.f32 %v1190, %v1423
    %v1425 = vpop.f32.mrb[0].mxu0
    %v1426 = vadd.f32 %v1194, %v1425
    %1427 = vdwg.mxu0
    %1428 = vmatprep.subr.mxu0 %v1168
    %1429 = vmatpush1.msra.mxu0 %v1167
    %1430 = vmatprep.subr.mxu0 0.0
    %1431 = vmatpush1.msra.mxu0 0.0
    %1432 = vmatprep.subr.mxu0 0.0
    %1433 = vmatpush1.msra.mxu0 0.0
    %1434 = vmatprep.subr.mxu0 0.0
    %1435 = vmatpush1.msra.mxu0 0.0
    %1436 = vmatprep.subr.mxu0 0.0
    %1437 = vmatpush1.msra.mxu0 0.0
    %1438 = vmatprep.subr.mxu0 0.0
    %1439 = vmatpush1.msra.mxu0 0.0
    %1440 = vmatprep.subr.mxu0 0.0
    %1441 = vmatpush1.msra.mxu0 0.0
    %1442 = vmatprep.subr.mxu0 0.0
    %1443 = vmatpush1.msra.mxu0 0.0
    %1444 = vmatprep.subr.mxu0 0.0
    %1445 = vmatpush1.msra.mxu0 0.0
    %1446 = vmatprep.subr.mxu0 0.0
    %1447 = vmatpush1.msra.mxu0 0.0
    %1448 = vmatprep.subr.mxu0 0.0
    %1449 = vmatpush1.msra.mxu0 0.0
    %1450 = vmatprep.subr.mxu0 0.0
    %1451 = vmatpush1.msra.mxu0 0.0
    %1452 = vmatprep.subr.mxu0 0.0
    %1453 = vmatpush1.msra.mxu0 0.0
    %1454 = vmatprep.subr.mxu0 0.0
    %1455 = vmatpush1.msra.mxu0 0.0
    %1456 = vmatprep.subr.mxu0 0.0
    %1457 = vmatpush1.msra.mxu0 0.0
    %1458 = vmatprep.subr.mxu0 0.0
    %1459 = vmatpush1.msra.mxu0 0.0
    %1460 = vmatprep.subr.mxu0 0.0
    %1461 = vmatpush1.msra.mxu0 0.0
    %1462 = vmatprep.subr.mxu0 0.0
    %1463 = vmatpush1.msra.mxu0 0.0
    %1464 = vmatprep.subr.mxu0 0.0
    %1465 = vmatpush1.msra.mxu0 0.0
    %1466 = vmatprep.subr.mxu0 0.0
    %1467 = vmatpush1.msra.mxu0 0.0
    %1468 = vmatprep.subr.mxu0 0.0
    %1469 = vmatpush1.msra.mxu0 0.0
    %1470 = vmatprep.subr.mxu0 0.0
    %1471 = vmatpush1.msra.mxu0 0.0
    %1472 = vmatprep.subr.mxu0 0.0
    %1473 = vmatpush1.msra.mxu0 0.0
    %1474 = vmatprep.subr.mxu0 0.0
    %1475 = vmatpush1.msra.mxu0 0.0
    %1476 = vmatprep.subr.mxu0 0.0
    %1477 = vmatpush1.msra.mxu0 0.0
    %1478 = vmatprep.subr.mxu0 0.0
    %1479 = vmatpush1.msra.mxu0 0.0
    %1480 = vmatprep.subr.mxu0 0.0
    %1481 = vmatpush1.msra.mxu0 0.0
    %1482 = vmatprep.subr.mxu0 0.0
    %1483 = vmatpush1.msra.mxu0 0.0
    %1484 = vmatprep.subr.mxu0 0.0
    %1485 = vmatpush1.msra.mxu0 0.0
    %1486 = vmatprep.subr.mxu0 0.0
    %1487 = vmatpush1.msra.mxu0 0.0
    %1488 = vmatprep.subr.mxu0 0.0
    %1489 = vmatpush1.msra.mxu0 0.0
    %1490 = vmatprep.subr.mxu0 0.0
    %1491 = vmatpush1.msra.mxu0 0.0
    %1492 = vmatprep.mubr.f32.mxu0 0.0
    %1493 = vmatmul.mubr.f32.gmra.mrb[0].mxu0 %v1213
    %v1494 = vpop.f32.mrb[0].mxu0
    %v1495 = vadd.f32 %v1198, %v1494
    %v1496 = vpop.f32.mrb[0].mxu0
    %v1497 = vadd.f32 %v1202, %v1496
    %1498 = vdwg.mxu0
    %vm1499 = vcmp.ge.f32.partialorder %v1282, 0.0
    %vm1500 = vcmp.ge.f32.partialorder %v1284, 0.0
    %vm1501 = vcmp.ge.f32.partialorder %v1353, 0.0
    %vm1502 = vcmp.ge.f32.partialorder %v1355, 0.0
    %vm1503 = vcmp.ge.f32.partialorder %v1424, 0.0
    %vm1504 = vcmp.ge.f32.partialorder %v1426, 0.0
    %vm1505 = vcmp.ge.f32.partialorder %v1495, 0.0
    %vm1506 = vcmp.ge.f32.partialorder %v1497, 0.0
    %v1507 = vmul.f32 %v1282, 0.01
    %v1508 = vmul.f32 %v1284, 0.01
    %v1509 = vmul.f32 %v1353, 0.01
    %v1510 = vmul.f32 %v1355, 0.01
    %v1511 = vmul.f32 %v1424, 0.01
    %v1512 = vmul.f32 %v1426, 0.01
    %v1513 = vmul.f32 %v1495, 0.01
    %v1514 = vmul.f32 %v1497, 0.01
    %v1515 = vsel %vm1499, %v1282, %v1507
    %v1516 = vsel %vm1500, %v1284, %v1508
    %v1517 = vsel %vm1501, %v1353, %v1509
    %v1518 = vsel %vm1502, %v1355, %v1510
    %v1519 = vsel %vm1503, %v1424, %v1511
    %v1520 = vsel %vm1504, %v1426, %v1512
    %v1521 = vsel %vm1505, %v1495, %v1513
    %v1522 = vsel %vm1506, %v1497, %v1514
    %v1523 = vld [vmem:[#allocation5] sm:$0xff]
    %v1524 = vld [vmem:[#allocation5 + $0x8] sm:$0xff]
    %v1525 = vld [vmem:[#allocation5 + $0x10] sm:$0xff]
    %v1526 = vld [vmem:[#allocation5 + $0x18] sm:$0xff]
    %v1527 = vld [vmem:[#allocation5 + $0x20] sm:$0xff]
    %v1528 = vld [vmem:[#allocation5 + $0x28] sm:$0xff]
    %v1529 = vld [vmem:[#allocation5 + $0x30] sm:$0xff]
    %v1530 = vld [vmem:[#allocation5 + $0x38] sm:$0xff]
    %v1531 = vld [vmem:[#allocation5 + $0x40] sm:$0xff]
    %v1532 = vld [vmem:[#allocation5 + $0x48] sm:$0xff]
    %v1533 = vld [vmem:[#allocation5 + $0x50] sm:$0xff]
    %v1534 = vld [vmem:[#allocation5 + $0x58] sm:$0xff]
    %v1535 = vld [vmem:[#allocation5 + $0x60] sm:$0xff]
    %v1536 = vld [vmem:[#allocation5 + $0x68] sm:$0xff]
    %v1537 = vld [vmem:[#allocation5 + $0x70] sm:$0xff]
    %v1538 = vld [vmem:[#allocation5 + $0x78] sm:$0xff]
    %v1539 = vld [vmem:[#allocation5 + $0x80] sm:$0xff]
    %v1540 = vld [vmem:[#allocation5 + $0x88] sm:$0xff]
    %v1541 = vld [vmem:[#allocation5 + $0x90] sm:$0xff]
    %v1542 = vld [vmem:[#allocation5 + $0x98] sm:$0xff]
    %v1543 = vld [vmem:[#allocation5 + $0xa0] sm:$0xff]
    %v1544 = vld [vmem:[#allocation5 + $0xa8] sm:$0xff]
    %v1545 = vld [vmem:[#allocation5 + $0xb0] sm:$0xff]
    %v1546 = vld [vmem:[#allocation5 + $0xb8] sm:$0xff]
    %v1547 = vld [vmem:[#allocation5 + $0xc0] sm:$0xff]
    %v1548 = vld [vmem:[#allocation5 + $0xc8] sm:$0xff]
    %v1549 = vld [vmem:[#allocation5 + $0xd0] sm:$0xff]
    %v1550 = vld [vmem:[#allocation5 + $0xd8] sm:$0xff]
    %v1551 = vld [vmem:[#allocation5 + $0xe0] sm:$0xff]
    %v1552 = vld [vmem:[#allocation5 + $0xe8] sm:$0xff]
    %v1553 = vld [vmem:[#allocation5 + $0xf0] sm:$0xff]
    %v1554 = vld [vmem:[#allocation5 + $0xf8] sm:$0xff]
    %v1555 = vld [vmem:[#allocation5 + $0x100] sm:$0xff]
    %v1556 = vld [vmem:[#allocation5 + $0x108] sm:$0xff]
    %v1557 = vld [vmem:[#allocation5 + $0x110] sm:$0xff]
    %v1558 = vld [vmem:[#allocation5 + $0x118] sm:$0xff]
    %v1559 = vld [vmem:[#allocation5 + $0x120] sm:$0xff]
    %v1560 = vld [vmem:[#allocation5 + $0x128] sm:$0xff]
    %v1561 = vld [vmem:[#allocation5 + $0x130] sm:$0xff]
    %v1562 = vld [vmem:[#allocation5 + $0x138] sm:$0xff]
    %v1563 = vld [vmem:[#allocation5 + $0x140] sm:$0xff]
    %v1564 = vld [vmem:[#allocation5 + $0x148] sm:$0xff]
    %v1565 = vld [vmem:[#allocation5 + $0x150] sm:$0xff]
    %v1566 = vld [vmem:[#allocation5 + $0x158] sm:$0xff]
    %v1567 = vld [vmem:[#allocation5 + $0x160] sm:$0xff]
    %v1568 = vld [vmem:[#allocation5 + $0x168] sm:$0xff]
    %v1569 = vld [vmem:[#allocation5 + $0x170] sm:$0xff]
    %v1570 = vld [vmem:[#allocation5 + $0x178] sm:$0xff]
    %v1571 = vld [vmem:[#allocation5 + $0x180] sm:$0xff]
    %v1572 = vld [vmem:[#allocation5 + $0x188] sm:$0xff]
    %v1573 = vld [vmem:[#allocation5 + $0x190] sm:$0xff]
    %v1574 = vld [vmem:[#allocation5 + $0x198] sm:$0xff]
    %v1575 = vld [vmem:[#allocation5 + $0x1a0] sm:$0xff]
    %v1576 = vld [vmem:[#allocation5 + $0x1a8] sm:$0xff]
    %v1577 = vld [vmem:[#allocation5 + $0x1b0] sm:$0xff]
    %v1578 = vld [vmem:[#allocation5 + $0x1b8] sm:$0xff]
    %v1579 = vld [vmem:[#allocation5 + $0x1c0] sm:$0xff]
    %v1580 = vld [vmem:[#allocation5 + $0x1c8] sm:$0xff]
    %v1581 = vld [vmem:[#allocation5 + $0x1d0] sm:$0xff]
    %v1582 = vld [vmem:[#allocation5 + $0x1d8] sm:$0xff]
    %v1583 = vld [vmem:[#allocation5 + $0x1e0] sm:$0xff]
    %v1584 = vld [vmem:[#allocation5 + $0x1e8] sm:$0xff]
    %v1585 = vld [vmem:[#allocation5 + $0x1f0] sm:$0xff]
    %v1586 = vld [vmem:[#allocation5 + $0x1f8] sm:$0xff]
    %v1587 = vld [vmem:[#allocation5 + $0x200] sm:$0xff]
    %v1588 = vld [vmem:[#allocation5 + $0x208] sm:$0xff]
    %v1589 = vld [vmem:[#allocation5 + $0x210] sm:$0xff]
    %v1590 = vld [vmem:[#allocation5 + $0x218] sm:$0xff]
    %v1591 = vld [vmem:[#allocation5 + $0x220] sm:$0xff]
    %v1592 = vld [vmem:[#allocation5 + $0x228] sm:$0xff]
    %v1593 = vld [vmem:[#allocation5 + $0x230] sm:$0xff]
    %v1594 = vld [vmem:[#allocation5 + $0x238] sm:$0xff]
    %v1595 = vld [vmem:[#allocation5 + $0x240] sm:$0xff]
    %v1596 = vld [vmem:[#allocation5 + $0x248] sm:$0xff]
    %v1597 = vld [vmem:[#allocation5 + $0x250] sm:$0xff]
    %v1598 = vld [vmem:[#allocation5 + $0x258] sm:$0xff]
    %v1599 = vld [vmem:[#allocation5 + $0x260] sm:$0xff]
    %v1600 = vld [vmem:[#allocation5 + $0x268] sm:$0xff]
    %v1601 = vld [vmem:[#allocation5 + $0x270] sm:$0xff]
    %v1602 = vld [vmem:[#allocation5 + $0x278] sm:$0xff]
    %v1603 = vld [vmem:[#allocation5 + $0x280] sm:$0xff]
    %v1604 = vld [vmem:[#allocation5 + $0x288] sm:$0xff]
    %v1605 = vld [vmem:[#allocation5 + $0x290] sm:$0xff]
    %v1606 = vld [vmem:[#allocation5 + $0x298] sm:$0xff]
    %v1607 = vld [vmem:[#allocation5 + $0x2a0] sm:$0xff]
    %v1608 = vld [vmem:[#allocation5 + $0x2a8] sm:$0xff]
    %v1609 = vld [vmem:[#allocation5 + $0x2b0] sm:$0xff]
    %v1610 = vld [vmem:[#allocation5 + $0x2b8] sm:$0xff]
    %v1611 = vld [vmem:[#allocation5 + $0x2c0] sm:$0xff]
    %v1612 = vld [vmem:[#allocation5 + $0x2c8] sm:$0xff]
    %v1613 = vld [vmem:[#allocation5 + $0x2d0] sm:$0xff]
    %v1614 = vld [vmem:[#allocation5 + $0x2d8] sm:$0xff]
    %v1615 = vld [vmem:[#allocation5 + $0x2e0] sm:$0xff]
    %v1616 = vld [vmem:[#allocation5 + $0x2e8] sm:$0xff]
    %v1617 = vld [vmem:[#allocation5 + $0x2f0] sm:$0xff]
    %v1618 = vld [vmem:[#allocation5 + $0x2f8] sm:$0xff]
    %v1619 = vld [vmem:[#allocation5 + $0x300] sm:$0xff]
    %v1620 = vld [vmem:[#allocation5 + $0x308] sm:$0xff]
    %v1621 = vld [vmem:[#allocation5 + $0x310] sm:$0xff]
    %v1622 = vld [vmem:[#allocation5 + $0x318] sm:$0xff]
    %v1623 = vld [vmem:[#allocation5 + $0x320] sm:$0xff]
    %v1624 = vld [vmem:[#allocation5 + $0x328] sm:$0xff]
    %v1625 = vld [vmem:[#allocation5 + $0x330] sm:$0xff]
    %v1626 = vld [vmem:[#allocation5 + $0x338] sm:$0xff]
    %v1627 = vld [vmem:[#allocation5 + $0x340] sm:$0xff]
    %v1628 = vld [vmem:[#allocation5 + $0x348] sm:$0xff]
    %v1629 = vld [vmem:[#allocation5 + $0x350] sm:$0xff]
    %v1630 = vld [vmem:[#allocation5 + $0x358] sm:$0xff]
    %v1631 = vld [vmem:[#allocation5 + $0x360] sm:$0xff]
    %v1632 = vld [vmem:[#allocation5 + $0x368] sm:$0xff]
    %v1633 = vld [vmem:[#allocation5 + $0x370] sm:$0xff]
    %v1634 = vld [vmem:[#allocation5 + $0x378] sm:$0xff]
    %v1635 = vld [vmem:[#allocation5 + $0x380] sm:$0xff]
    %v1636 = vld [vmem:[#allocation5 + $0x388] sm:$0xff]
    %v1637 = vld [vmem:[#allocation5 + $0x390] sm:$0xff]
    %v1638 = vld [vmem:[#allocation5 + $0x398] sm:$0xff]
    %v1639 = vld [vmem:[#allocation5 + $0x3a0] sm:$0xff]
    %v1640 = vld [vmem:[#allocation5 + $0x3a8] sm:$0xff]
    %v1641 = vld [vmem:[#allocation5 + $0x3b0] sm:$0xff]
    %v1642 = vld [vmem:[#allocation5 + $0x3b8] sm:$0xff]
    %v1643 = vld [vmem:[#allocation5 + $0x3c0] sm:$0xff]
    %v1644 = vld [vmem:[#allocation5 + $0x3c8] sm:$0xff]
    %v1645 = vld [vmem:[#allocation5 + $0x3d0] sm:$0xff]
    %v1646 = vld [vmem:[#allocation5 + $0x3d8] sm:$0xff]
    %v1647 = vld [vmem:[#allocation5 + $0x3e0] sm:$0xff]
    %v1648 = vld [vmem:[#allocation5 + $0x3e8] sm:$0xff]
    %v1649 = vld [vmem:[#allocation5 + $0x3f0] sm:$0xff]
    %v1650 = vld [vmem:[#allocation5 + $0x3f8] sm:$0xff]
    %v1651 = vld [vmem:[#allocation5 + $0x400] sm:$0xff]
    %v1652 = vld [vmem:[#allocation5 + $0x408] sm:$0xff]
    %v1653 = vld [vmem:[#allocation5 + $0x410] sm:$0xff]
    %v1654 = vld [vmem:[#allocation5 + $0x418] sm:$0xff]
    %v1655 = vld [vmem:[#allocation5 + $0x420] sm:$0xff]
    %v1656 = vld [vmem:[#allocation5 + $0x428] sm:$0xff]
    %v1657 = vld [vmem:[#allocation5 + $0x430] sm:$0xff]
    %v1658 = vld [vmem:[#allocation5 + $0x438] sm:$0xff]
    %v1659 = vld [vmem:[#allocation5 + $0x440] sm:$0xff]
    %v1660 = vld [vmem:[#allocation5 + $0x448] sm:$0xff]
    %v1661 = vld [vmem:[#allocation5 + $0x450] sm:$0xff]
    %v1662 = vld [vmem:[#allocation5 + $0x458] sm:$0xff]
    %v1663 = vld [vmem:[#allocation5 + $0x460] sm:$0xff]
    %v1664 = vld [vmem:[#allocation5 + $0x468] sm:$0xff]
    %v1665 = vld [vmem:[#allocation5 + $0x470] sm:$0xff]
    %v1666 = vld [vmem:[#allocation5 + $0x478] sm:$0xff]
    %v1667 = vld [vmem:[#allocation5 + $0x480] sm:$0xff]
    %v1668 = vld [vmem:[#allocation5 + $0x488] sm:$0xff]
    %v1669 = vld [vmem:[#allocation5 + $0x490] sm:$0xff]
    %v1670 = vld [vmem:[#allocation5 + $0x498] sm:$0xff]
    %v1671 = vld [vmem:[#allocation5 + $0x4a0] sm:$0xff]
    %v1672 = vld [vmem:[#allocation5 + $0x4a8] sm:$0xff]
    %v1673 = vld [vmem:[#allocation5 + $0x4b0] sm:$0xff]
    %v1674 = vld [vmem:[#allocation5 + $0x4b8] sm:$0xff]
    %v1675 = vld [vmem:[#allocation5 + $0x4c0] sm:$0xff]
    %v1676 = vld [vmem:[#allocation5 + $0x4c8] sm:$0xff]
    %v1677 = vld [vmem:[#allocation5 + $0x4d0] sm:$0xff]
    %v1678 = vld [vmem:[#allocation5 + $0x4d8] sm:$0xff]
    %v1679 = vld [vmem:[#allocation5 + $0x4e0] sm:$0xff]
    %v1680 = vld [vmem:[#allocation5 + $0x4e8] sm:$0xff]
    %v1681 = vld [vmem:[#allocation5 + $0x4f0] sm:$0xff]
    %v1682 = vld [vmem:[#allocation5 + $0x4f8] sm:$0xff]
    %v1683 = vld [vmem:[#allocation5 + $0x500] sm:$0xff]
    %v1684 = vld [vmem:[#allocation5 + $0x508] sm:$0xff]
    %v1685 = vld [vmem:[#allocation5 + $0x510] sm:$0xff]
    %v1686 = vld [vmem:[#allocation5 + $0x518] sm:$0xff]
    %v1687 = vld [vmem:[#allocation5 + $0x520] sm:$0xff]
    %v1688 = vld [vmem:[#allocation5 + $0x528] sm:$0xff]
    %v1689 = vld [vmem:[#allocation5 + $0x530] sm:$0xff]
    %v1690 = vld [vmem:[#allocation5 + $0x538] sm:$0xff]
    %v1691 = vld [vmem:[#allocation5 + $0x540] sm:$0xff]
    %v1692 = vld [vmem:[#allocation5 + $0x548] sm:$0xff]
    %v1693 = vld [vmem:[#allocation5 + $0x550] sm:$0xff]
    %v1694 = vld [vmem:[#allocation5 + $0x558] sm:$0xff]
    %v1695 = vld [vmem:[#allocation5 + $0x560] sm:$0xff]
    %v1696 = vld [vmem:[#allocation5 + $0x568] sm:$0xff]
    %v1697 = vld [vmem:[#allocation5 + $0x570] sm:$0xff]
    %v1698 = vld [vmem:[#allocation5 + $0x578] sm:$0xff]
    %v1699 = vld [vmem:[#allocation5 + $0x580] sm:$0xff]
    %v1700 = vld [vmem:[#allocation5 + $0x588] sm:$0xff]
    %v1701 = vld [vmem:[#allocation5 + $0x590] sm:$0xff]
    %v1702 = vld [vmem:[#allocation5 + $0x598] sm:$0xff]
    %v1703 = vld [vmem:[#allocation5 + $0x5a0] sm:$0xff]
    %v1704 = vld [vmem:[#allocation5 + $0x5a8] sm:$0xff]
    %v1705 = vld [vmem:[#allocation5 + $0x5b0] sm:$0xff]
    %v1706 = vld [vmem:[#allocation5 + $0x5b8] sm:$0xff]
    %v1707 = vld [vmem:[#allocation5 + $0x5c0] sm:$0xff]
    %v1708 = vld [vmem:[#allocation5 + $0x5c8] sm:$0xff]
    %v1709 = vld [vmem:[#allocation5 + $0x5d0] sm:$0xff]
    %v1710 = vld [vmem:[#allocation5 + $0x5d8] sm:$0xff]
    %v1711 = vld [vmem:[#allocation5 + $0x5e0] sm:$0xff]
    %v1712 = vld [vmem:[#allocation5 + $0x5e8] sm:$0xff]
    %v1713 = vld [vmem:[#allocation5 + $0x5f0] sm:$0xff]
    %v1714 = vld [vmem:[#allocation5 + $0x5f8] sm:$0xff]
    %v1715 = vld [vmem:[#allocation5 + $0x600] sm:$0xff]
    %v1716 = vld [vmem:[#allocation5 + $0x608] sm:$0xff]
    %v1717 = vld [vmem:[#allocation5 + $0x610] sm:$0xff]
    %v1718 = vld [vmem:[#allocation5 + $0x618] sm:$0xff]
    %v1719 = vld [vmem:[#allocation5 + $0x620] sm:$0xff]
    %v1720 = vld [vmem:[#allocation5 + $0x628] sm:$0xff]
    %v1721 = vld [vmem:[#allocation5 + $0x630] sm:$0xff]
    %v1722 = vld [vmem:[#allocation5 + $0x638] sm:$0xff]
    %v1723 = vld [vmem:[#allocation5 + $0x640] sm:$0xff]
    %v1724 = vld [vmem:[#allocation5 + $0x648] sm:$0xff]
    %v1725 = vld [vmem:[#allocation5 + $0x650] sm:$0xff]
    %v1726 = vld [vmem:[#allocation5 + $0x658] sm:$0xff]
    %v1727 = vld [vmem:[#allocation5 + $0x660] sm:$0xff]
    %v1728 = vld [vmem:[#allocation5 + $0x668] sm:$0xff]
    %v1729 = vld [vmem:[#allocation5 + $0x670] sm:$0xff]
    %v1730 = vld [vmem:[#allocation5 + $0x678] sm:$0xff]
    %v1731 = vld [vmem:[#allocation5 + $0x680] sm:$0xff]
    %v1732 = vld [vmem:[#allocation5 + $0x688] sm:$0xff]
    %v1733 = vld [vmem:[#allocation5 + $0x690] sm:$0xff]
    %v1734 = vld [vmem:[#allocation5 + $0x698] sm:$0xff]
    %v1735 = vld [vmem:[#allocation5 + $0x6a0] sm:$0xff]
    %v1736 = vld [vmem:[#allocation5 + $0x6a8] sm:$0xff]
    %v1737 = vld [vmem:[#allocation5 + $0x6b0] sm:$0xff]
    %v1738 = vld [vmem:[#allocation5 + $0x6b8] sm:$0xff]
    %v1739 = vld [vmem:[#allocation5 + $0x6c0] sm:$0xff]
    %v1740 = vld [vmem:[#allocation5 + $0x6c8] sm:$0xff]
    %v1741 = vld [vmem:[#allocation5 + $0x6d0] sm:$0xff]
    %v1742 = vld [vmem:[#allocation5 + $0x6d8] sm:$0xff]
    %v1743 = vld [vmem:[#allocation5 + $0x6e0] sm:$0xff]
    %v1744 = vld [vmem:[#allocation5 + $0x6e8] sm:$0xff]
    %v1745 = vld [vmem:[#allocation5 + $0x6f0] sm:$0xff]
    %v1746 = vld [vmem:[#allocation5 + $0x6f8] sm:$0xff]
    %v1747 = vld [vmem:[#allocation5 + $0x700] sm:$0xff]
    %v1748 = vld [vmem:[#allocation5 + $0x708] sm:$0xff]
    %v1749 = vld [vmem:[#allocation5 + $0x710] sm:$0xff]
    %v1750 = vld [vmem:[#allocation5 + $0x718] sm:$0xff]
    %v1751 = vld [vmem:[#allocation5 + $0x720] sm:$0xff]
    %v1752 = vld [vmem:[#allocation5 + $0x728] sm:$0xff]
    %v1753 = vld [vmem:[#allocation5 + $0x730] sm:$0xff]
    %v1754 = vld [vmem:[#allocation5 + $0x738] sm:$0xff]
    %v1755 = vld [vmem:[#allocation5 + $0x740] sm:$0xff]
    %v1756 = vld [vmem:[#allocation5 + $0x748] sm:$0xff]
    %v1757 = vld [vmem:[#allocation5 + $0x750] sm:$0xff]
    %v1758 = vld [vmem:[#allocation5 + $0x758] sm:$0xff]
    %v1759 = vld [vmem:[#allocation5 + $0x760] sm:$0xff]
    %v1760 = vld [vmem:[#allocation5 + $0x768] sm:$0xff]
    %v1761 = vld [vmem:[#allocation5 + $0x770] sm:$0xff]
    %v1762 = vld [vmem:[#allocation5 + $0x778] sm:$0xff]
    %v1763 = vld [vmem:[#allocation5 + $0x780] sm:$0xff]
    %v1764 = vld [vmem:[#allocation5 + $0x788] sm:$0xff]
    %v1765 = vld [vmem:[#allocation5 + $0x790] sm:$0xff]
    %v1766 = vld [vmem:[#allocation5 + $0x798] sm:$0xff]
    %v1767 = vld [vmem:[#allocation5 + $0x7a0] sm:$0xff]
    %v1768 = vld [vmem:[#allocation5 + $0x7a8] sm:$0xff]
    %v1769 = vld [vmem:[#allocation5 + $0x7b0] sm:$0xff]
    %v1770 = vld [vmem:[#allocation5 + $0x7b8] sm:$0xff]
    %v1771 = vld [vmem:[#allocation5 + $0x7c0] sm:$0xff]
    %v1772 = vld [vmem:[#allocation5 + $0x7c8] sm:$0xff]
    %v1773 = vld [vmem:[#allocation5 + $0x7d0] sm:$0xff]
    %v1774 = vld [vmem:[#allocation5 + $0x7d8] sm:$0xff]
    %v1775 = vld [vmem:[#allocation5 + $0x7e0] sm:$0xff]
    %v1776 = vld [vmem:[#allocation5 + $0x7e8] sm:$0xff]
    %v1777 = vld [vmem:[#allocation5 + $0x7f0] sm:$0xff]
    %v1778 = vld [vmem:[#allocation5 + $0x7f8] sm:$0xff]
    %v1779 = vld [vmem:[%s9] sm:$0x3]
    %v1781 = vlaneseq
    %v1782 = vshrl.u32 %v1781, 7
    %v1783 = vsub.s32 0, %v1782
    %v1784 = vrot.slane %v1779, %v1783
    %v1785 = vlaneseq
    %v1786 = vshrl.u32 %v1785, 7
    %v1787 = vsub.s32 1, %v1786
    %v1788 = vrot.slane %v1779, %v1787
    %1791 = vmatprep.subr.mxu0 %v1524
    %1792 = vmatpush1.msra.mxu0 %v1523
    %1793 = vmatprep.subr.mxu0 %v1526
    %1794 = vmatpush1.msra.mxu0 %v1525
    %1795 = vmatprep.subr.mxu0 %v1528
    %1796 = vmatpush1.msra.mxu0 %v1527
    %1797 = vmatprep.subr.mxu0 %v1530
    %1798 = vmatpush1.msra.mxu0 %v1529
    %1799 = vmatprep.subr.mxu0 %v1532
    %1800 = vmatpush1.msra.mxu0 %v1531
    %1801 = vmatprep.subr.mxu0 %v1534
    %1802 = vmatpush1.msra.mxu0 %v1533
    %1803 = vmatprep.subr.mxu0 %v1536
    %1804 = vmatpush1.msra.mxu0 %v1535
    %1805 = vmatprep.subr.mxu0 %v1538
    %1806 = vmatpush1.msra.mxu0 %v1537
    %1807 = vmatprep.subr.mxu0 %v1540
    %1808 = vmatpush1.msra.mxu0 %v1539
    %1809 = vmatprep.subr.mxu0 %v1542
    %1810 = vmatpush1.msra.mxu0 %v1541
    %1811 = vmatprep.subr.mxu0 %v1544
    %1812 = vmatpush1.msra.mxu0 %v1543
    %1813 = vmatprep.subr.mxu0 %v1546
    %1814 = vmatpush1.msra.mxu0 %v1545
    %1815 = vmatprep.subr.mxu0 %v1548
    %1816 = vmatpush1.msra.mxu0 %v1547
    %1817 = vmatprep.subr.mxu0 %v1550
    %1818 = vmatpush1.msra.mxu0 %v1549
    %1819 = vmatprep.subr.mxu0 %v1552
    %1820 = vmatpush1.msra.mxu0 %v1551
    %1821 = vmatprep.subr.mxu0 %v1554
    %1822 = vmatpush1.msra.mxu0 %v1553
    %1823 = vmatprep.subr.mxu0 %v1556
    %1824 = vmatpush1.msra.mxu0 %v1555
    %1825 = vmatprep.subr.mxu0 %v1558
    %1826 = vmatpush1.msra.mxu0 %v1557
    %1827 = vmatprep.subr.mxu0 %v1560
    %1828 = vmatpush1.msra.mxu0 %v1559
    %1829 = vmatprep.subr.mxu0 %v1562
    %1830 = vmatpush1.msra.mxu0 %v1561
    %1831 = vmatprep.subr.mxu0 %v1564
    %1832 = vmatpush1.msra.mxu0 %v1563
    %1833 = vmatprep.subr.mxu0 %v1566
    %1834 = vmatpush1.msra.mxu0 %v1565
    %1835 = vmatprep.subr.mxu0 %v1568
    %1836 = vmatpush1.msra.mxu0 %v1567
    %1837 = vmatprep.subr.mxu0 %v1570
    %1838 = vmatpush1.msra.mxu0 %v1569
    %1839 = vmatprep.subr.mxu0 %v1572
    %1840 = vmatpush1.msra.mxu0 %v1571
    %1841 = vmatprep.subr.mxu0 %v1574
    %1842 = vmatpush1.msra.mxu0 %v1573
    %1843 = vmatprep.subr.mxu0 %v1576
    %1844 = vmatpush1.msra.mxu0 %v1575
    %1845 = vmatprep.subr.mxu0 %v1578
    %1846 = vmatpush1.msra.mxu0 %v1577
    %1847 = vmatprep.subr.mxu0 %v1580
    %1848 = vmatpush1.msra.mxu0 %v1579
    %1849 = vmatprep.subr.mxu0 %v1582
    %1850 = vmatpush1.msra.mxu0 %v1581
    %1851 = vmatprep.subr.mxu0 %v1584
    %1852 = vmatpush1.msra.mxu0 %v1583
    %1853 = vmatprep.subr.mxu0 %v1586
    %1854 = vmatpush1.msra.mxu0 %v1585
    %1855 = vmatprep.mubr.f32.mxu0 %v1516
    %1856 = vmatmul.mubr.f32.gmra.mrb[0].mxu0 %v1515
    %v1857 = vpop.f32.mrb[0].mxu0
    %v1858 = vadd.f32 %v1784, %v1857
    %v1859 = vpop.f32.mrb[0].mxu0
    %v1860 = vadd.f32 %v1788, %v1859
    %1861 = vdwg.mxu0
    %1862 = vmatprep.subr.mxu0 %v1588
    %1863 = vmatpush1.msra.mxu0 %v1587
    %1864 = vmatprep.subr.mxu0 %v1590
    %1865 = vmatpush1.msra.mxu0 %v1589
    %1866 = vmatprep.subr.mxu0 %v1592
    %1867 = vmatpush1.msra.mxu0 %v1591
    %1868 = vmatprep.subr.mxu0 %v1594
    %1869 = vmatpush1.msra.mxu0 %v1593
    %1870 = vmatprep.subr.mxu0 %v1596
    %1871 = vmatpush1.msra.mxu0 %v1595
    %1872 = vmatprep.subr.mxu0 %v1598
    %1873 = vmatpush1.msra.mxu0 %v1597
    %1874 = vmatprep.subr.mxu0 %v1600
    %1875 = vmatpush1.msra.mxu0 %v1599
    %1876 = vmatprep.subr.mxu0 %v1602
    %1877 = vmatpush1.msra.mxu0 %v1601
    %1878 = vmatprep.subr.mxu0 %v1604
    %1879 = vmatpush1.msra.mxu0 %v1603
    %1880 = vmatprep.subr.mxu0 %v1606
    %1881 = vmatpush1.msra.mxu0 %v1605
    %1882 = vmatprep.subr.mxu0 %v1608
    %1883 = vmatpush1.msra.mxu0 %v1607
    %1884 = vmatprep.subr.mxu0 %v1610
    %1885 = vmatpush1.msra.mxu0 %v1609
    %1886 = vmatprep.subr.mxu0 %v1612
    %1887 = vmatpush1.msra.mxu0 %v1611
    %1888 = vmatprep.subr.mxu0 %v1614
    %1889 = vmatpush1.msra.mxu0 %v1613
    %1890 = vmatprep.subr.mxu0 %v1616
    %1891 = vmatpush1.msra.mxu0 %v1615
    %1892 = vmatprep.subr.mxu0 %v1618
    %1893 = vmatpush1.msra.mxu0 %v1617
    %1894 = vmatprep.subr.mxu0 %v1620
    %1895 = vmatpush1.msra.mxu0 %v1619
    %1896 = vmatprep.subr.mxu0 %v1622
    %1897 = vmatpush1.msra.mxu0 %v1621
    %1898 = vmatprep.subr.mxu0 %v1624
    %1899 = vmatpush1.msra.mxu0 %v1623
    %1900 = vmatprep.subr.mxu0 %v1626
    %1901 = vmatpush1.msra.mxu0 %v1625
    %1902 = vmatprep.subr.mxu0 %v1628
    %1903 = vmatpush1.msra.mxu0 %v1627
    %1904 = vmatprep.subr.mxu0 %v1630
    %1905 = vmatpush1.msra.mxu0 %v1629
    %1906 = vmatprep.subr.mxu0 %v1632
    %1907 = vmatpush1.msra.mxu0 %v1631
    %1908 = vmatprep.subr.mxu0 %v1634
    %1909 = vmatpush1.msra.mxu0 %v1633
    %1910 = vmatprep.subr.mxu0 %v1636
    %1911 = vmatpush1.msra.mxu0 %v1635
    %1912 = vmatprep.subr.mxu0 %v1638
    %1913 = vmatpush1.msra.mxu0 %v1637
    %1914 = vmatprep.subr.mxu0 %v1640
    %1915 = vmatpush1.msra.mxu0 %v1639
    %1916 = vmatprep.subr.mxu0 %v1642
    %1917 = vmatpush1.msra.mxu0 %v1641
    %1918 = vmatprep.subr.mxu0 %v1644
    %1919 = vmatpush1.msra.mxu0 %v1643
    %1920 = vmatprep.subr.mxu0 %v1646
    %1921 = vmatpush1.msra.mxu0 %v1645
    %1922 = vmatprep.subr.mxu0 %v1648
    %1923 = vmatpush1.msra.mxu0 %v1647
    %1924 = vmatprep.subr.mxu0 %v1650
    %1925 = vmatpush1.msra.mxu0 %v1649
    %1926 = vmatprep.mubr.f32.mxu0 %v1518
    %1927 = vmatmul.mubr.f32.gmra.mrb[0].mxu0 %v1517
    %v1928 = vpop.f32.mrb[0].mxu0
    %v1929 = vadd.f32 %v1858, %v1928
    %v1930 = vpop.f32.mrb[0].mxu0
    %v1931 = vadd.f32 %v1860, %v1930
    %1932 = vdwg.mxu0
    %1933 = vmatprep.subr.mxu0 %v1652
    %1934 = vmatpush1.msra.mxu0 %v1651
    %1935 = vmatprep.subr.mxu0 %v1654
    %1936 = vmatpush1.msra.mxu0 %v1653
    %1937 = vmatprep.subr.mxu0 %v1656
    %1938 = vmatpush1.msra.mxu0 %v1655
    %1939 = vmatprep.subr.mxu0 %v1658
    %1940 = vmatpush1.msra.mxu0 %v1657
    %1941 = vmatprep.subr.mxu0 %v1660
    %1942 = vmatpush1.msra.mxu0 %v1659
    %1943 = vmatprep.subr.mxu0 %v1662
    %1944 = vmatpush1.msra.mxu0 %v1661
    %1945 = vmatprep.subr.mxu0 %v1664
    %1946 = vmatpush1.msra.mxu0 %v1663
    %1947 = vmatprep.subr.mxu0 %v1666
    %1948 = vmatpush1.msra.mxu0 %v1665
    %1949 = vmatprep.subr.mxu0 %v1668
    %1950 = vmatpush1.msra.mxu0 %v1667
    %1951 = vmatprep.subr.mxu0 %v1670
    %1952 = vmatpush1.msra.mxu0 %v1669
    %1953 = vmatprep.subr.mxu0 %v1672
    %1954 = vmatpush1.msra.mxu0 %v1671
    %1955 = vmatprep.subr.mxu0 %v1674
    %1956 = vmatpush1.msra.mxu0 %v1673
    %1957 = vmatprep.subr.mxu0 %v1676
    %1958 = vmatpush1.msra.mxu0 %v1675
    %1959 = vmatprep.subr.mxu0 %v1678
    %1960 = vmatpush1.msra.mxu0 %v1677
    %1961 = vmatprep.subr.mxu0 %v1680
    %1962 = vmatpush1.msra.mxu0 %v1679
    %1963 = vmatprep.subr.mxu0 %v1682
    %1964 = vmatpush1.msra.mxu0 %v1681
    %1965 = vmatprep.subr.mxu0 %v1684
    %1966 = vmatpush1.msra.mxu0 %v1683
    %1967 = vmatprep.subr.mxu0 %v1686
    %1968 = vmatpush1.msra.mxu0 %v1685
    %1969 = vmatprep.subr.mxu0 %v1688
    %1970 = vmatpush1.msra.mxu0 %v1687
    %1971 = vmatprep.subr.mxu0 %v1690
    %1972 = vmatpush1.msra.mxu0 %v1689
    %1973 = vmatprep.subr.mxu0 %v1692
    %1974 = vmatpush1.msra.mxu0 %v1691
    %1975 = vmatprep.subr.mxu0 %v1694
    %1976 = vmatpush1.msra.mxu0 %v1693
    %1977 = vmatprep.subr.mxu0 %v1696
    %1978 = vmatpush1.msra.mxu0 %v1695
    %1979 = vmatprep.subr.mxu0 %v1698
    %1980 = vmatpush1.msra.mxu0 %v1697
    %1981 = vmatprep.subr.mxu0 %v1700
    %1982 = vmatpush1.msra.mxu0 %v1699
    %1983 = vmatprep.subr.mxu0 %v1702
    %1984 = vmatpush1.msra.mxu0 %v1701
    %1985 = vmatprep.subr.mxu0 %v1704
    %1986 = vmatpush1.msra.mxu0 %v1703
    %1987 = vmatprep.subr.mxu0 %v1706
    %1988 = vmatpush1.msra.mxu0 %v1705
    %1989 = vmatprep.subr.mxu0 %v1708
    %1990 = vmatpush1.msra.mxu0 %v1707
    %1991 = vmatprep.subr.mxu0 %v1710
    %1992 = vmatpush1.msra.mxu0 %v1709
    %1993 = vmatprep.subr.mxu0 %v1712
    %1994 = vmatpush1.msra.mxu0 %v1711
    %1995 = vmatprep.subr.mxu0 %v1714
    %1996 = vmatpush1.msra.mxu0 %v1713
    %1997 = vmatprep.mubr.f32.mxu0 %v1520
    %1998 = vmatmul.mubr.f32.gmra.mrb[0].mxu0 %v1519
    %v1999 = vpop.f32.mrb[0].mxu0
    %v2000 = vadd.f32 %v1929, %v1999
    %v2001 = vpop.f32.mrb[0].mxu0
    %v2002 = vadd.f32 %v1931, %v2001
    %2003 = vdwg.mxu0
    %2004 = vmatprep.subr.mxu0 %v1716
    %2005 = vmatpush1.msra.mxu0 %v1715
    %2006 = vmatprep.subr.mxu0 %v1718
    %2007 = vmatpush1.msra.mxu0 %v1717
    %2008 = vmatprep.subr.mxu0 %v1720
    %2009 = vmatpush1.msra.mxu0 %v1719
    %2010 = vmatprep.subr.mxu0 %v1722
    %2011 = vmatpush1.msra.mxu0 %v1721
    %2012 = vmatprep.subr.mxu0 %v1724
    %2013 = vmatpush1.msra.mxu0 %v1723
    %2014 = vmatprep.subr.mxu0 %v1726
    %2015 = vmatpush1.msra.mxu0 %v1725
    %2016 = vmatprep.subr.mxu0 %v1728
    %2017 = vmatpush1.msra.mxu0 %v1727
    %2018 = vmatprep.subr.mxu0 %v1730
    %2019 = vmatpush1.msra.mxu0 %v1729
    %2020 = vmatprep.subr.mxu0 %v1732
    %2021 = vmatpush1.msra.mxu0 %v1731
    %2022 = vmatprep.subr.mxu0 %v1734
    %2023 = vmatpush1.msra.mxu0 %v1733
    %2024 = vmatprep.subr.mxu0 %v1736
    %2025 = vmatpush1.msra.mxu0 %v1735
    %2026 = vmatprep.subr.mxu0 %v1738
    %2027 = vmatpush1.msra.mxu0 %v1737
    %2028 = vmatprep.subr.mxu0 %v1740
    %2029 = vmatpush1.msra.mxu0 %v1739
    %2030 = vmatprep.subr.mxu0 %v1742
    %2031 = vmatpush1.msra.mxu0 %v1741
    %2032 = vmatprep.subr.mxu0 %v1744
    %2033 = vmatpush1.msra.mxu0 %v1743
    %2034 = vmatprep.subr.mxu0 %v1746
    %2035 = vmatpush1.msra.mxu0 %v1745
    %2036 = vmatprep.subr.mxu0 %v1748
    %2037 = vmatpush1.msra.mxu0 %v1747
    %2038 = vmatprep.subr.mxu0 %v1750
    %2039 = vmatpush1.msra.mxu0 %v1749
    %2040 = vmatprep.subr.mxu0 %v1752
    %2041 = vmatpush1.msra.mxu0 %v1751
    %2042 = vmatprep.subr.mxu0 %v1754
    %2043 = vmatpush1.msra.mxu0 %v1753
    %2044 = vmatprep.subr.mxu0 %v1756
    %2045 = vmatpush1.msra.mxu0 %v1755
    %2046 = vmatprep.subr.mxu0 %v1758
    %2047 = vmatpush1.msra.mxu0 %v1757
    %2048 = vmatprep.subr.mxu0 %v1760
    %2049 = vmatpush1.msra.mxu0 %v1759
    %2050 = vmatprep.subr.mxu0 %v1762
    %2051 = vmatpush1.msra.mxu0 %v1761
    %2052 = vmatprep.subr.mxu0 %v1764
    %2053 = vmatpush1.msra.mxu0 %v1763
    %2054 = vmatprep.subr.mxu0 %v1766
    %2055 = vmatpush1.msra.mxu0 %v1765
    %2056 = vmatprep.subr.mxu0 %v1768
    %2057 = vmatpush1.msra.mxu0 %v1767
    %2058 = vmatprep.subr.mxu0 %v1770
    %2059 = vmatpush1.msra.mxu0 %v1769
    %2060 = vmatprep.subr.mxu0 %v1772
    %2061 = vmatpush1.msra.mxu0 %v1771
    %2062 = vmatprep.subr.mxu0 %v1774
    %2063 = vmatpush1.msra.mxu0 %v1773
    %2064 = vmatprep.subr.mxu0 %v1776
    %2065 = vmatpush1.msra.mxu0 %v1775
    %2066 = vmatprep.subr.mxu0 %v1778
    %2067 = vmatpush1.msra.mxu0 %v1777
    %2068 = vmatprep.mubr.f32.mxu0 %v1522
    %2069 = vmatmul.mubr.f32.gmra.mrb[0].mxu0 %v1521
    %v2070 = vpop.f32.mrb[0].mxu0
    %v2071 = vadd.f32 %v2000, %v2070
    %v2072 = vpop.f32.mrb[0].mxu0
    %v2073 = vadd.f32 %v2002, %v2072
    %2074 = vdwg.mxu0
    %vm2075 = vcmp.ge.f32.partialorder %v2071, 0.0
    %vm2076 = vcmp.ge.f32.partialorder %v2073, 0.0
    %v2077 = vmul.f32 %v2071, 0.01
    %v2078 = vmul.f32 %v2073, 0.01
    %v2079 = vsel %vm2075, %v2071, %v2077
    %v2080 = vsel %vm2076, %v2073, %v2078
    %v2081 = vld [vmem:[%s10] sm:$0xff]
    %v2082 = vld [vmem:[%s10 + $0x8] sm:$0xff]
    %v2083 = vld [vmem:[%s10 + $0x10] sm:$0xff]
    %v2084 = vld [vmem:[%s10 + $0x18] sm:$0xff]
    %v2085 = vld [vmem:[%s10 + $0x20] sm:$0xff]
    %v2086 = vld [vmem:[%s10 + $0x28] sm:$0xff]
    %v2087 = vld [vmem:[%s10 + $0x30] sm:$0xff]
    %v2088 = vld [vmem:[%s10 + $0x38] sm:$0xff]
    %v2089 = vld [vmem:[%s10 + $0x40] sm:$0xff]
    %v2090 = vld [vmem:[%s10 + $0x48] sm:$0xff]
    %v2091 = vld [vmem:[%s10 + $0x50] sm:$0xff]
    %v2092 = vld [vmem:[%s10 + $0x58] sm:$0xff]
    %v2093 = vld [vmem:[%s10 + $0x60] sm:$0xff]
    %v2094 = vld [vmem:[%s10 + $0x68] sm:$0xff]
    %v2095 = vld [vmem:[%s10 + $0x70] sm:$0xff]
    %v2096 = vld [vmem:[%s10 + $0x78] sm:$0xff]
    %v2097 = vld [vmem:[%s10 + $0x80] sm:$0xff]
    %v2098 = vld [vmem:[%s10 + $0x88] sm:$0xff]
    %v2099 = vld [vmem:[%s10 + $0x90] sm:$0xff]
    %v2100 = vld [vmem:[%s10 + $0x98] sm:$0xff]
    %v2101 = vld [vmem:[%s10 + $0xa0] sm:$0xff]
    %v2102 = vld [vmem:[%s10 + $0xa8] sm:$0xff]
    %v2103 = vld [vmem:[%s10 + $0xb0] sm:$0xff]
    %v2104 = vld [vmem:[%s10 + $0xb8] sm:$0xff]
    %v2105 = vld [vmem:[%s10 + $0xc0] sm:$0xff]
    %v2106 = vld [vmem:[%s10 + $0xc8] sm:$0xff]
    %v2107 = vld [vmem:[%s10 + $0xd0] sm:$0xff]
    %v2108 = vld [vmem:[%s10 + $0xd8] sm:$0xff]
    %v2109 = vld [vmem:[%s10 + $0xe0] sm:$0xff]
    %v2110 = vld [vmem:[%s10 + $0xe8] sm:$0xff]
    %v2111 = vld [vmem:[%s10 + $0xf0] sm:$0xff]
    %v2112 = vld [vmem:[%s10 + $0xf8] sm:$0xff]
    %v2113 = vld [vmem:[%s10 + $0x100] sm:$0xff]
    %v2114 = vld [vmem:[%s10 + $0x108] sm:$0xff]
    %v2115 = vld [vmem:[%s10 + $0x110] sm:$0xff]
    %v2116 = vld [vmem:[%s10 + $0x118] sm:$0xff]
    %v2117 = vld [vmem:[%s10 + $0x120] sm:$0xff]
    %v2118 = vld [vmem:[%s10 + $0x128] sm:$0xff]
    %v2119 = vld [vmem:[%s10 + $0x130] sm:$0xff]
    %v2120 = vld [vmem:[%s10 + $0x138] sm:$0xff]
    %v2121 = vld [vmem:[%s10 + $0x140] sm:$0xff]
    %v2122 = vld [vmem:[%s10 + $0x148] sm:$0xff]
    %v2123 = vld [vmem:[%s10 + $0x150] sm:$0xff]
    %v2124 = vld [vmem:[%s10 + $0x158] sm:$0xff]
    %v2125 = vld [vmem:[%s10 + $0x160] sm:$0xff]
    %v2126 = vld [vmem:[%s10 + $0x168] sm:$0xff]
    %v2127 = vld [vmem:[%s10 + $0x170] sm:$0xff]
    %v2128 = vld [vmem:[%s10 + $0x178] sm:$0xff]
    %v2129 = vld [vmem:[%s10 + $0x180] sm:$0xff]
    %v2130 = vld [vmem:[%s10 + $0x188] sm:$0xff]
    %v2131 = vld [vmem:[%s10 + $0x190] sm:$0xff]
    %v2132 = vld [vmem:[%s10 + $0x198] sm:$0xff]
    %v2133 = vld [vmem:[%s10 + $0x1a0] sm:$0xff]
    %v2134 = vld [vmem:[%s10 + $0x1a8] sm:$0xff]
    %v2135 = vld [vmem:[%s10 + $0x1b0] sm:$0xff]
    %v2136 = vld [vmem:[%s10 + $0x1b8] sm:$0xff]
    %v2137 = vld [vmem:[%s10 + $0x1c0] sm:$0xff]
    %v2138 = vld [vmem:[%s10 + $0x1c8] sm:$0xff]
    %v2139 = vld [vmem:[%s10 + $0x1d0] sm:$0xff]
    %v2140 = vld [vmem:[%s10 + $0x1d8] sm:$0xff]
    %v2141 = vld [vmem:[%s10 + $0x1e0] sm:$0xff]
    %v2142 = vld [vmem:[%s10 + $0x1e8] sm:$0xff]
    %v2143 = vld [vmem:[%s10 + $0x1f0] sm:$0xff]
    %v2144 = vld [vmem:[%s10 + $0x1f8] sm:$0xff]
    %v2145 = vld [vmem:[%s10 + $0x200] sm:$0xff]
    %v2146 = vld [vmem:[%s10 + $0x208] sm:$0xff]
    %v2147 = vld [vmem:[%s10 + $0x210] sm:$0xff]
    %v2148 = vld [vmem:[%s10 + $0x218] sm:$0xff]
    %v2149 = vld [vmem:[%s10 + $0x220] sm:$0xff]
    %v2150 = vld [vmem:[%s10 + $0x228] sm:$0xff]
    %v2151 = vld [vmem:[%s10 + $0x230] sm:$0xff]
    %v2152 = vld [vmem:[%s10 + $0x238] sm:$0xff]
    %v2153 = vld [vmem:[%s10 + $0x240] sm:$0xff]
    %v2154 = vld [vmem:[%s10 + $0x248] sm:$0xff]
    %v2155 = vld [vmem:[%s10 + $0x250] sm:$0xff]
    %v2156 = vld [vmem:[%s10 + $0x258] sm:$0xff]
    %v2157 = vld [vmem:[%s10 + $0x260] sm:$0xff]
    %v2158 = vld [vmem:[%s10 + $0x268] sm:$0xff]
    %v2159 = vld [vmem:[%s10 + $0x270] sm:$0xff]
    %v2160 = vld [vmem:[%s10 + $0x278] sm:$0xff]
    %v2161 = vld [vmem:[%s10 + $0x280] sm:$0xff]
    %v2162 = vld [vmem:[%s10 + $0x288] sm:$0xff]
    %v2163 = vld [vmem:[%s10 + $0x290] sm:$0xff]
    %v2164 = vld [vmem:[%s10 + $0x298] sm:$0xff]
    %v2165 = vld [vmem:[%s10 + $0x2a0] sm:$0xff]
    %v2166 = vld [vmem:[%s10 + $0x2a8] sm:$0xff]
    %v2167 = vld [vmem:[%s10 + $0x2b0] sm:$0xff]
    %v2168 = vld [vmem:[%s10 + $0x2b8] sm:$0xff]
    %v2169 = vld [vmem:[%s10 + $0x2c0] sm:$0xff]
    %v2170 = vld [vmem:[%s10 + $0x2c8] sm:$0xff]
    %v2171 = vld [vmem:[%s10 + $0x2d0] sm:$0xff]
    %v2172 = vld [vmem:[%s10 + $0x2d8] sm:$0xff]
    %v2173 = vld [vmem:[%s10 + $0x2e0] sm:$0xff]
    %v2174 = vld [vmem:[%s10 + $0x2e8] sm:$0xff]
    %v2175 = vld [vmem:[%s10 + $0x2f0] sm:$0xff]
    %v2176 = vld [vmem:[%s10 + $0x2f8] sm:$0xff]
    %v2177 = vld [vmem:[%s10 + $0x300] sm:$0xff]
    %v2178 = vld [vmem:[%s10 + $0x308] sm:$0xff]
    %v2179 = vld [vmem:[%s10 + $0x310] sm:$0xff]
    %v2180 = vld [vmem:[%s10 + $0x318] sm:$0xff]
    %v2181 = vld [vmem:[%s10 + $0x320] sm:$0xff]
    %v2182 = vld [vmem:[%s10 + $0x328] sm:$0xff]
    %v2183 = vld [vmem:[%s10 + $0x330] sm:$0xff]
    %v2184 = vld [vmem:[%s10 + $0x338] sm:$0xff]
    %v2185 = vld [vmem:[%s10 + $0x340] sm:$0xff]
    %v2186 = vld [vmem:[%s10 + $0x348] sm:$0xff]
    %v2187 = vld [vmem:[%s10 + $0x350] sm:$0xff]
    %v2188 = vld [vmem:[%s10 + $0x358] sm:$0xff]
    %v2189 = vld [vmem:[%s10 + $0x360] sm:$0xff]
    %v2190 = vld [vmem:[%s10 + $0x368] sm:$0xff]
    %v2191 = vld [vmem:[%s10 + $0x370] sm:$0xff]
    %v2192 = vld [vmem:[%s10 + $0x378] sm:$0xff]
    %v2193 = vld [vmem:[%s10 + $0x380] sm:$0xff]
    %v2194 = vld [vmem:[%s10 + $0x388] sm:$0xff]
    %v2195 = vld [vmem:[%s10 + $0x390] sm:$0xff]
    %v2196 = vld [vmem:[%s10 + $0x398] sm:$0xff]
    %v2197 = vld [vmem:[%s10 + $0x3a0] sm:$0xff]
    %v2198 = vld [vmem:[%s10 + $0x3a8] sm:$0xff]
    %v2199 = vld [vmem:[%s10 + $0x3b0] sm:$0xff]
    %v2200 = vld [vmem:[%s10 + $0x3b8] sm:$0xff]
    %v2201 = vld [vmem:[%s10 + $0x3c0] sm:$0xff]
    %v2202 = vld [vmem:[%s10 + $0x3c8] sm:$0xff]
    %v2203 = vld [vmem:[%s10 + $0x3d0] sm:$0xff]
    %v2204 = vld [vmem:[%s10 + $0x3d8] sm:$0xff]
    %v2205 = vld [vmem:[%s10 + $0x3e0] sm:$0xff]
    %v2206 = vld [vmem:[%s10 + $0x3e8] sm:$0xff]
    %v2207 = vld [vmem:[%s10 + $0x3f0] sm:$0xff]
    %v2208 = vld [vmem:[%s10 + $0x3f8] sm:$0xff]
    %v2209 = vld [vmem:[%s11] sm:$0xf]
    %v2211 = vlaneseq
    %v2212 = vshrl.u32 %v2211, 7
    %v2213 = vsub.s32 0, %v2212
    %v2214 = vrot.slane %v2209, %v2213
    %v2215 = vlaneseq
    %v2216 = vshrl.u32 %v2215, 7
    %v2217 = vsub.s32 1, %v2216
    %v2218 = vrot.slane %v2209, %v2217
    %v2219 = vlaneseq
    %v2220 = vshrl.u32 %v2219, 7
    %v2221 = vsub.s32 2, %v2220
    %v2222 = vrot.slane %v2209, %v2221
    %v2223 = vlaneseq
    %v2224 = vshrl.u32 %v2223, 7
    %v2225 = vsub.s32 3, %v2224
    %v2226 = vrot.slane %v2209, %v2225
    %2231 = vmatprep.subr.mxu0 %v2082
    %2232 = vmatpush1.msra.mxu0 %v2081
    %2233 = vmatprep.subr.mxu0 %v2086
    %2234 = vmatpush1.msra.mxu0 %v2085
    %2235 = vmatprep.subr.mxu0 %v2090
    %2236 = vmatpush1.msra.mxu0 %v2089
    %2237 = vmatprep.subr.mxu0 %v2094
    %2238 = vmatpush1.msra.mxu0 %v2093
    %2239 = vmatprep.subr.mxu0 %v2098
    %2240 = vmatpush1.msra.mxu0 %v2097
    %2241 = vmatprep.subr.mxu0 %v2102
    %2242 = vmatpush1.msra.mxu0 %v2101
    %2243 = vmatprep.subr.mxu0 %v2106
    %2244 = vmatpush1.msra.mxu0 %v2105
    %2245 = vmatprep.subr.mxu0 %v2110
    %2246 = vmatpush1.msra.mxu0 %v2109
    %2247 = vmatprep.subr.mxu0 %v2114
    %2248 = vmatpush1.msra.mxu0 %v2113
    %2249 = vmatprep.subr.mxu0 %v2118
    %2250 = vmatpush1.msra.mxu0 %v2117
    %2251 = vmatprep.subr.mxu0 %v2122
    %2252 = vmatpush1.msra.mxu0 %v2121
    %2253 = vmatprep.subr.mxu0 %v2126
    %2254 = vmatpush1.msra.mxu0 %v2125
    %2255 = vmatprep.subr.mxu0 %v2130
    %2256 = vmatpush1.msra.mxu0 %v2129
    %2257 = vmatprep.subr.mxu0 %v2134
    %2258 = vmatpush1.msra.mxu0 %v2133
    %2259 = vmatprep.subr.mxu0 %v2138
    %2260 = vmatpush1.msra.mxu0 %v2137
    %2261 = vmatprep.subr.mxu0 %v2142
    %2262 = vmatpush1.msra.mxu0 %v2141
    %2263 = vmatprep.subr.mxu0 %v2146
    %2264 = vmatpush1.msra.mxu0 %v2145
    %2265 = vmatprep.subr.mxu0 %v2150
    %2266 = vmatpush1.msra.mxu0 %v2149
    %2267 = vmatprep.subr.mxu0 %v2154
    %2268 = vmatpush1.msra.mxu0 %v2153
    %2269 = vmatprep.subr.mxu0 %v2158
    %2270 = vmatpush1.msra.mxu0 %v2157
    %2271 = vmatprep.subr.mxu0 %v2162
    %2272 = vmatpush1.msra.mxu0 %v2161
    %2273 = vmatprep.subr.mxu0 %v2166
    %2274 = vmatpush1.msra.mxu0 %v2165
    %2275 = vmatprep.subr.mxu0 %v2170
    %2276 = vmatpush1.msra.mxu0 %v2169
    %2277 = vmatprep.subr.mxu0 %v2174
    %2278 = vmatpush1.msra.mxu0 %v2173
    %2279 = vmatprep.subr.mxu0 %v2178
    %2280 = vmatpush1.msra.mxu0 %v2177
    %2281 = vmatprep.subr.mxu0 %v2182
    %2282 = vmatpush1.msra.mxu0 %v2181
    %2283 = vmatprep.subr.mxu0 %v2186
    %2284 = vmatpush1.msra.mxu0 %v2185
    %2285 = vmatprep.subr.mxu0 %v2190
    %2286 = vmatpush1.msra.mxu0 %v2189
    %2287 = vmatprep.subr.mxu0 %v2194
    %2288 = vmatpush1.msra.mxu0 %v2193
    %2289 = vmatprep.subr.mxu0 %v2198
    %2290 = vmatpush1.msra.mxu0 %v2197
    %2291 = vmatprep.subr.mxu0 %v2202
    %2292 = vmatpush1.msra.mxu0 %v2201
    %2293 = vmatprep.subr.mxu0 %v2206
    %2294 = vmatpush1.msra.mxu0 %v2205
    %2295 = vmatprep.mubr.f32.mxu0 %v2080
    %2296 = vmatmul.mubr.f32.gmra.mrb[0].mxu0 %v2079
    %v2297 = vpop.f32.mrb[0].mxu0
    %v2298 = vadd.f32 %v2214, %v2297
    %v2299 = vpop.f32.mrb[0].mxu0
    %v2300 = vadd.f32 %v2218, %v2299
    %2301 = vdwg.mxu0
    %2302 = vmatprep.subr.mxu0 %v2084
    %2303 = vmatpush1.msra.mxu0 %v2083
    %2304 = vmatprep.subr.mxu0 %v2088
    %2305 = vmatpush1.msra.mxu0 %v2087
    %2306 = vmatprep.subr.mxu0 %v2092
    %2307 = vmatpush1.msra.mxu0 %v2091
    %2308 = vmatprep.subr.mxu0 %v2096
    %2309 = vmatpush1.msra.mxu0 %v2095
    %2310 = vmatprep.subr.mxu0 %v2100
    %2311 = vmatpush1.msra.mxu0 %v2099
    %2312 = vmatprep.subr.mxu0 %v2104
    %2313 = vmatpush1.msra.mxu0 %v2103
    %2314 = vmatprep.subr.mxu0 %v2108
    %2315 = vmatpush1.msra.mxu0 %v2107
    %2316 = vmatprep.subr.mxu0 %v2112
    %2317 = vmatpush1.msra.mxu0 %v2111
    %2318 = vmatprep.subr.mxu0 %v2116
    %2319 = vmatpush1.msra.mxu0 %v2115
    %2320 = vmatprep.subr.mxu0 %v2120
    %2321 = vmatpush1.msra.mxu0 %v2119
    %2322 = vmatprep.subr.mxu0 %v2124
    %2323 = vmatpush1.msra.mxu0 %v2123
    %2324 = vmatprep.subr.mxu0 %v2128
    %2325 = vmatpush1.msra.mxu0 %v2127
    %2326 = vmatprep.subr.mxu0 %v2132
    %2327 = vmatpush1.msra.mxu0 %v2131
    %2328 = vmatprep.subr.mxu0 %v2136
    %2329 = vmatpush1.msra.mxu0 %v2135
    %2330 = vmatprep.subr.mxu0 %v2140
    %2331 = vmatpush1.msra.mxu0 %v2139
    %2332 = vmatprep.subr.mxu0 %v2144
    %2333 = vmatpush1.msra.mxu0 %v2143
    %2334 = vmatprep.subr.mxu0 %v2148
    %2335 = vmatpush1.msra.mxu0 %v2147
    %2336 = vmatprep.subr.mxu0 %v2152
    %2337 = vmatpush1.msra.mxu0 %v2151
    %2338 = vmatprep.subr.mxu0 %v2156
    %2339 = vmatpush1.msra.mxu0 %v2155
    %2340 = vmatprep.subr.mxu0 %v2160
    %2341 = vmatpush1.msra.mxu0 %v2159
    %2342 = vmatprep.subr.mxu0 %v2164
    %2343 = vmatpush1.msra.mxu0 %v2163
    %2344 = vmatprep.subr.mxu0 %v2168
    %2345 = vmatpush1.msra.mxu0 %v2167
    %2346 = vmatprep.subr.mxu0 %v2172
    %2347 = vmatpush1.msra.mxu0 %v2171
    %2348 = vmatprep.subr.mxu0 %v2176
    %2349 = vmatpush1.msra.mxu0 %v2175
    %2350 = vmatprep.subr.mxu0 %v2180
    %2351 = vmatpush1.msra.mxu0 %v2179
    %2352 = vmatprep.subr.mxu0 %v2184
    %2353 = vmatpush1.msra.mxu0 %v2183
    %2354 = vmatprep.subr.mxu0 %v2188
    %2355 = vmatpush1.msra.mxu0 %v2187
    %2356 = vmatprep.subr.mxu0 %v2192
    %2357 = vmatpush1.msra.mxu0 %v2191
    %2358 = vmatprep.subr.mxu0 %v2196
    %2359 = vmatpush1.msra.mxu0 %v2195
    %2360 = vmatprep.subr.mxu0 %v2200
    %2361 = vmatpush1.msra.mxu0 %v2199
    %2362 = vmatprep.subr.mxu0 %v2204
    %2363 = vmatpush1.msra.mxu0 %v2203
    %2364 = vmatprep.subr.mxu0 %v2208
    %2365 = vmatpush1.msra.mxu0 %v2207
    %2366 = vmatprep.mubr.f32.mxu0 %v2080
    %2367 = vmatmul.mubr.f32.gmra.mrb[0].mxu0 %v2079
    %v2368 = vpop.f32.mrb[0].mxu0
    %v2369 = vadd.f32 %v2222, %v2368
    %v2370 = vpop.f32.mrb[0].mxu0
    %v2371 = vadd.f32 %v2226, %v2370
    %2372 = vdwg.mxu0
    %v2373 = vsub.f32 %v2298, %v382
    %v2374 = vsub.f32 %v2300, %v383
    %v2375 = vmul.f32 %v2373, %v2373
    %v2376 = vmul.f32 %v2374, %v2374
    %v2377 = vmul.f32 %v2375, 0.5
    %v2378 = vmul.f32 %v2376, 0.5
    %v2379 = vsub.f32 0.0, %v2369
    %v2380 = vsub.f32 0.0, %v2371
    %v2381 = vmul.f32 %v2379, 1.442695
    %v2382 = vpow.pop %v2381
    %v2383 = vmul.f32 %v2380, 1.442695
    %v2384 = vpow.pop %v2383
    %v2385 = vmul.f32 %v2377, %v2382
    %v2386 = vmul.f32 %v2378, %v2384
    %v2387 = vmul.f32 %v2369, 0.5
    %v2388 = vmul.f32 %v2371, 0.5
    %v2389 = vadd.f32 %v2385, %v2387
    %v2390 = vadd.f32 %v2386, %v2388
    %v2391 = vadd.f32 %v2389, 0.9189385
    %v2392 = vadd.f32 %v2390, 0.9189385
    %v2393 = vsel %vm1152, %v2391, 0.0
    %v2394 = vsel %vm1152, %v2392, 0.0
    %v2395 = vadd.f32 %v2393, %v2394
    %2396 = vadd.xlane.f32.xlu0 %v2395
    %v2397 = vpop.xlane.xlu0 %2396
    %v2398 = vsel %vm1152, %v2397, 0.0
    %v2399 = vrot.slane %v2398, 4
    %v2400 = vadd.f32 %v2398, %v2399
    %v2401 = vrot.slane %v2400, 2
    %v2402 = vadd.f32 %v2400, %v2401
    %v2403 = vrot.slane %v2402, 1
    %v2404 = vadd.f32 %v2402, %v2403
    %v2405 = vmul.f32 %v2404, 0.5
    %vm2406 = vcmask 0
    %2407 = vst.msk [vmem:[#allocation11] sm:$0x1] %vm2406, %v1160
    %2408 = vst.msk [vmem:[#allocation10] sm:$0x1] %vm2406, %v2405
    %v2409 = vadd.f32 %v2405, %v1160
    %2410 = vst.msk [vmem:[#allocation8] sm:$0x1] %vm2406, %v2409
    // Predicated region
    $region58: #{vae_forward.1} parent=1 // pred_check
      _
    $region59: #{vae_forward.1} parent=1 // pred_check_branch
      %2412 = sbr.rel (0) target = $region61
    $region60: #{vae_forward.1} parent=1 // pred_region
      %s2414 = ssub.s32 32, 32
      %2415 = vsyncadd [#allocation4], %s2414
      %s2417 = sshll.u32 [#allocation7], 4
      %s2418 = int_to_ptr.vmem [resolvable:$true] %s2417
      %2420 = dma.vmem_to_hbm [thread:$0]  %s2418, 32, %s12, [#allocation4]
    $region61: #{vae_forward.1} parent=1 // pred_fallthru
      _
    // Predicated region
    $region62: #{vae_forward.1} parent=1 // pred_check
      _
    $region63: #{vae_forward.1} parent=1 // pred_check_branch
      %2422 = sbr.rel (0) target = $region65
    $region64: #{vae_forward.1} parent=1 // pred_region
      %s2424 = ssub.s32 16, 16
      %2425 = vsyncadd [#allocation9], %s2424
      %s2427 = sshll.u32 [#allocation8], 4
      %s2428 = int_to_ptr.vmem [resolvable:$true] %s2427
      %2430 = dma.vmem_to_hbm [thread:$0]  %s2428, 16, %s13, [#allocation9]
    $region65: #{vae_forward.1} parent=1 // pred_fallthru
      _
    // Predicated region
    $region66: #{vae_forward.1} parent=1 // pred_check
      _
    $region67: #{vae_forward.1} parent=1 // pred_check_branch
      %2432 = sbr.rel (0) target = $region69
    $region68: #{vae_forward.1} parent=1 // pred_region
      %s2434 = ssub.s32 16, 16
      %2435 = vsyncadd [#allocation9], %s2434
      %s2437 = sshll.u32 [#allocation10], 4
      %s2438 = int_to_ptr.vmem [resolvable:$true] %s2437
      %2440 = dma.vmem_to_hbm [thread:$0]  %s2438, 16, %s14, [#allocation9]
    $region69: #{vae_forward.1} parent=1 // pred_fallthru
      _
    // Predicated region
    $region70: #{vae_forward.1} parent=1 // pred_check
      _
    $region71: #{vae_forward.1} parent=1 // pred_check_branch
      %2442 = sbr.rel (0) target = $region73
    $region72: #{vae_forward.1} parent=1 // pred_region
      %s2444 = ssub.s32 16, 16
      %2445 = vsyncadd [#allocation12], %s2444
      %s2447 = sshll.u32 [#allocation11], 4
      %s2448 = int_to_ptr.vmem [resolvable:$true] %s2447
      %2450 = dma.vmem_to_hbm [thread:$0]  %s2448, 16, %s15, [#allocation12]
    $region73: #{vae_forward.1} parent=1 // pred_fallthru
      _
    // Predicated region
    $region74: #{vae_forward.1} parent=1 // pred_check
      _
    $region75: #{vae_forward.1} parent=1 // pred_check_branch
      %2452 = sbr.rel (0) target = $region77
    $region76: #{vae_forward.1} parent=1 // pred_region
      %2453 = dma.done [#allocation4], 32
    $region77: #{vae_forward.1} parent=1 // pred_fallthru
      _
    // Predicated region
    $region78: #{vae_forward.1} parent=1 // pred_check
      _
    $region79: #{vae_forward.1} parent=1 // pred_check_branch
      %2455 = sbr.rel (0) target = $region81
    $region80: #{vae_forward.1} parent=1 // pred_region
      %2456 = dma.done [#allocation9], 16
    $region81: #{vae_forward.1} parent=1 // pred_fallthru
      _
    // Predicated region
    $region82: #{vae_forward.1} parent=1 // pred_check
      _
    $region83: #{vae_forward.1} parent=1 // pred_check_branch
      %2458 = sbr.rel (0) target = $region85
    $region84: #{vae_forward.1} parent=1 // pred_region
      %2459 = dma.done [#allocation9], 16
    $region85: #{vae_forward.1} parent=1 // pred_fallthru
      _
    // Predicated region
    $region86: #{vae_forward.1} parent=1 // pred_check
      _
    $region87: #{vae_forward.1} parent=1 // pred_check_branch
      %2461 = sbr.rel (0) target = $region89
    $region88: #{vae_forward.1} parent=1 // pred_region
      %2462 = dma.done [#allocation12], 16
    $region89: #{vae_forward.1} parent=1 // pred_fallthru
      _
    %2463 = vsyncpa [#allocation3], 1
    %2464 = vsyncpa [#allocation6], 1
    %2465 = vsyncpa [#allocation4], 1
    %2466 = vsyncpa [#allocation9], 1
    %2467 = vsyncpa [#allocation12], 1

</llo_original>
